<compile_context>
chip_gen: v7x
topology: tpu7x:2x2x1
jax: 0.10.0
libtpu: 0.0.40
codegen_flags: <defaults>
</compile_context>

<pallas_src>
import functools

import numpy as np
import jax
import jax.numpy as jnp
from jax.experimental import pallas as pl
from jax.experimental.pallas import tpu as pltpu


def _sigmoid(t):
    # 1 / (1 + exp(-t)) with the divide on the EUP slot.
    return pl.reciprocal(1.0 + jnp.exp(-t), approx=True)


def _lane_shift(a, s):
    """Return b with b[..., n] = a[..., (n + s) mod N] (static shift s).

    Implemented as lane slices + concat (unambiguous, always lowers).  The
    wrapped-around entries are zeroed later by the precomputed conv masks.
    """
    n = a.shape[-1]
    s = s % n
    if s == 0:
        return a
    return jnp.concatenate([a[:, s:], a[:, :s]], axis=-1)


def fablock_kernel(scal_ref, x3_ref, xflat_ref, wpack_ref, maskw_ref,
                   out_ref, att_ref, *, H, W, Cr):
    B, C, HW = x3_ref.shape
    x3 = x3_ref[...]                                    # (B, C, HW)

    gamma = scal_ref[0]
    bn_w = scal_ref[1]
    bn_b = scal_ref[2]

    # ---- packed small weights ---------------------------------------------
    wp = wpack_ref[...]                                 # (C + 2 + 2*Cr, C)
    w2t = wp[0:C, :]                                    # conv2.weight.T (C, C)
    w1 = wp[C:C + 1, :]                                 # conv1 weight   (1, C)
    w3 = wp[C + 1:C + 2, :]                             # conv3 weight   (1, C)
    wfc1 = wp[C + 2:C + 2 + Cr, :]                      # fc1.weight     (Cr, C)
    wfc2t = wp[C + 2 + Cr:C + 2 + 2 * Cr, :]            # fc2.weight.T   (Cr, C)

    # ---- conv1 (1x1, C->1) + spatial softmax -------------------------------
    logits = jnp.sum(x3 * w1[:, :, None], axis=1)       # (B, HW)
    logits = logits - jnp.max(logits, axis=-1, keepdims=True)
    e = jnp.exp(logits)
    attn = e * pl.reciprocal(jnp.sum(e, axis=-1, keepdims=True), approx=True)

    # ---- channel descriptor: matmul(x.view(B,C,HW), attn) -> (B, C) --------
    ch = jnp.sum(x3 * attn[:, None, :], axis=-1)        # (B, C)

    # ---- channel_fc: Linear -> ReLU -> Linear -> sigmoid -------------------
    h = jnp.maximum(jnp.sum(ch[:, None, :] * wfc1[None, :, :], axis=-1), 0.0)
    gate = _sigmoid(jnp.dot(h, wfc2t, preferred_element_type=jnp.float32))

    # ---- conv2 (1x1, C->C): one (B*HW, C) @ (C, C) MXU matmul, gated --------
    xt2 = jnp.concatenate([x3[b].T for b in range(B)], axis=0)   # (B*HW, C)
    y2 = jnp.dot(xt2, w2t, preferred_element_type=jnp.float32)   # (B*HW, C)
    x_y = y2.reshape(B, HW, C) * gate[:, None, :]                # (B, HW, C)

    # ---- conv3 (1x1, C->1) --------------------------------------------------
    xyz = jnp.sum(x_y * w3[None, :, :], axis=-1)        # (B, HW)

    # ---- conv4 (3x3, 1->1, pad=1): 9 masked shifted FMAs --------------------
    mw = maskw_ref[...]                                 # (9, HW), weight*mask
    z = jnp.zeros_like(xyz)
    k = 0
    for di in (-1, 0, 1):
        for dj in (-1, 0, 1):
            z = z + mw[k:k + 1, :] * _lane_shift(xyz, di * W + dj)
            k += 1

    # ---- bn4: BatchNorm2d(1), training-mode batch stats (biased variance) ---
    mean = jnp.mean(z)
    var = jnp.mean((z - mean) ** 2)
    z = (z - mean) * jax.lax.rsqrt(var + 1e-5) * bn_w + bn_b
    z = _sigmoid(z)

    xyz_g = xyz * z                                     # x_y_z * z
    g = gamma * xyz_g                                   # gamma * x_y_z  (B, HW)

    # ---- out = gamma * x_y_z + x, stored lane-dense as (B, C*HW) ------------
    out_ref[...] = jnp.concatenate([g] * C, axis=-1) + xflat_ref[...]

    # ---- attention_outs: per-batch min-max norm, lane-dense (1, B*HW) -------
    mn = jnp.min(g, axis=-1, keepdims=True)
    mx = jnp.max(g, axis=-1, keepdims=True)
    nrm = mx - mn
    nrm = jnp.where(nrm == 0.0, 1e-5, nrm)
    att = (g - mn) * pl.reciprocal(nrm, approx=True)
    att_ref[...] = jnp.concatenate([att[b:b + 1, :] for b in range(B)], axis=1)


def _conv3x3_masks(H, W):
    """Validity masks (9, H*W) for a zero-padded 3x3 conv on the flat axis."""
    HW = H * W
    m = np.zeros((9, HW), dtype=np.float32)
    k = 0
    for di in (-1, 0, 1):
        for dj in (-1, 0, 1):
            for i in range(H):
                for j in range(W):
                    if 0 <= i + di < H and 0 <= j + dj < W:
                        m[k, i * W + j] = 1.0
            k += 1
    return m


def fablock_pallas(x_nchw, params):
    B, C, H, W = x_nchw.shape
    HW = H * W
    Cr = params['fc1'].shape[0]

    # Free (contiguous) reshapes of NCHW — no transposes in the wrapper.
    x3 = x_nchw.reshape(B, C, HW).astype(jnp.float32)
    xflat = x_nchw.reshape(B, C * HW).astype(jnp.float32)

    # Pack all small weights into one VMEM operand (rows, lanes=C).
    wpack = jnp.concatenate([
        params['conv2'].astype(jnp.float32).T,   # (C, C)   conv2.weight.T
        params['conv1'].astype(jnp.float32),     # (1, C)
        params['conv3'].astype(jnp.float32),     # (1, C)
        params['fc1'].astype(jnp.float32),       # (Cr, C)
        params['fc2'].astype(jnp.float32).T,     # (Cr, C)  fc2.weight.T
    ], axis=0)

    # 3x3 conv weights folded into the per-tap validity masks: (9, HW).
    maskw = (jnp.asarray(_conv3x3_masks(H, W))
             * params['conv4'].astype(jnp.float32).reshape(9)[:, None])

    scal = jnp.array([params['gamma'], params['bn_w'], params['bn_b']],
                     dtype=jnp.float32)

    kernel = functools.partial(fablock_kernel, H=H, W=W, Cr=Cr)
    vmem = lambda: pl.BlockSpec(memory_space=pltpu.MemorySpace.VMEM)
    smem = lambda: pl.BlockSpec(memory_space=pltpu.MemorySpace.SMEM)

    out_f, att_f = pl.pallas_call(
        kernel,
        out_shape=(jax.ShapeDtypeStruct((B, C * HW), jnp.float32),
                   jax.ShapeDtypeStruct((1, B * HW), jnp.float32)),
        in_specs=[smem(), vmem(), vmem(), vmem(), vmem()],
        out_specs=(vmem(), vmem()),
    )(scal, x3, xflat, wpack, maskw)

    # Free reshapes back to the PyTorch output shapes (no transposes).
    out = out_f.reshape(B, C, H, W)
    att = att_f.reshape(B, 1, H, W)
    return out, att


def fablock_ref(x, p):
    """Pure-JAX reference mirroring the PyTorch forward (NCHW)."""
    B, C, H, W = x.shape
    HW = H * W
    hp = jax.lax.Precision.HIGHEST
    y = jnp.einsum('bchw,oc->bohw', x, p['conv1'], precision=hp).reshape(B, 1, HW)
    y = jax.nn.softmax(y, axis=-1)
    y = jnp.transpose(y, (0, 2, 1))
    y = jnp.matmul(x.reshape(B, C, HW), y, precision=hp).reshape(B, C)
    h = jnp.maximum(jnp.dot(y, p['fc1'].T, precision=hp), 0.0)
    y = jax.nn.sigmoid(jnp.dot(h, p['fc2'].T, precision=hp))
    y = y[:, :, None, None]
    x_y = jnp.einsum('bchw,oc->bohw', x, p['conv2'], precision=hp) * y
    x_y_z = jnp.einsum('bchw,oc->bohw', x_y, p['conv3'], precision=hp)
    z = jax.lax.conv_general_dilated(
        x_y_z, p['conv4'][None, None, :, :], (1, 1), ((1, 1), (1, 1)),
        dimension_numbers=('NCHW', 'OIHW', 'NCHW'), precision=hp)
    mean = jnp.mean(z)
    var = jnp.mean((z - mean) ** 2)
    z = (z - mean) / jnp.sqrt(var + 1e-5) * p['bn_w'] + p['bn_b']
    z = jax.nn.sigmoid(z)
    x_y_z = x_y_z * z
    out = p['gamma'] * x_y_z + x
    g = (p['gamma'] * x_y_z).reshape(B, HW)
    mn = jnp.min(g, axis=1, keepdims=True)
    mx = jnp.max(g, axis=1, keepdims=True)
    nrm = jnp.where(mx - mn == 0.0, 1e-5, mx - mn)
    att = ((g - mn) / nrm).reshape(B, 1, H, W)
    return out, att


if __name__ == "__main__":
    B, C, H, W = 2, 16, 8, 8
    reduction = 8
    Cr = C // reduction

    key = jax.random.PRNGKey(0)
    ks = jax.random.split(key, 7)
    x = jax.random.normal(ks[0], (B, C, H, W), jnp.float32)

    s = 0.25
    params = dict(
        conv1=s * jax.random.normal(ks[1], (1, C), jnp.float32),    # conv1x1 C->1
        fc1=s * jax.random.normal(ks[2], (Cr, C), jnp.float32),     # Linear C->C/r
        fc2=s * jax.random.normal(ks[3], (C, Cr), jnp.float32),     # Linear C/r->C
        conv2=s * jax.random.normal(ks[4], (C, C), jnp.float32),    # conv1x1 C->C
        conv3=s * jax.random.normal(ks[5], (1, C), jnp.float32),    # conv1x1 C->1
        conv4=s * jax.random.normal(ks[6], (3, 3), jnp.float32),    # conv3x3 1->1
        gamma=jnp.float32(0.5),   # PyTorch inits 0.0; nonzero for a meaningful test
        bn_w=jnp.float32(1.0),
        bn_b=jnp.float32(0.0),
    )

    out, att = fablock_pallas(x, params)
    out = jax.block_until_ready(out)
    att = jax.block_until_ready(att)

    out_r, att_r = fablock_ref(x, params)
    assert out.shape == (B, C, H, W) and att.shape == (B, 1, H, W)
    assert jnp.allclose(out, out_r, atol=2e-2, rtol=2e-2), \
        float(jnp.max(jnp.abs(out - out_r)))
    assert jnp.allclose(att, att_r, atol=2e-2, rtol=2e-2), \
        float(jnp.max(jnp.abs(att - att_r)))

    print("KERNEL_OK")
</pallas_src>

<mosaic_0001>
module attributes {stable_mosaic.version = 11 : i64} {
  func.func @fablock_kernel(%arg0: memref<3xf32, #tpu.memory_space<smem>>, %arg1: memref<2x16x64xf32, #tpu.memory_space<vmem>>, %arg2: memref<2x1024xf32, #tpu.memory_space<vmem>>, %arg3: memref<22x16xf32, #tpu.memory_space<vmem>>, %arg4: memref<9x64xf32, #tpu.memory_space<vmem>>, %arg5: memref<2x1024xf32, #tpu.memory_space<vmem>>, %arg6: memref<1x128xf32, #tpu.memory_space<vmem>>) attributes {dimension_semantics = [], scalar_prefetch = 0 : i64, scratch_operands = 0 : i64, tpu.core_type = #tpu.core_type<tc>} {
    %c0 = arith.constant 0 : index
    %c0_0 = arith.constant 0 : index
    %c0_1 = arith.constant 0 : index
    %0 = vector.load %arg1[%c0, %c0_0, %c0_1] : memref<2x16x64xf32, #tpu.memory_space<vmem>>, vector<2x16x64xf32>
    %c0_2 = arith.constant 0 : index
    %1 = memref.load %arg0[%c0_2] : memref<3xf32, #tpu.memory_space<smem>>
    %c1 = arith.constant 1 : index
    %2 = memref.load %arg0[%c1] : memref<3xf32, #tpu.memory_space<smem>>
    %c2 = arith.constant 2 : index
    %3 = memref.load %arg0[%c2] : memref<3xf32, #tpu.memory_space<smem>>
    %c0_3 = arith.constant 0 : index
    %c0_4 = arith.constant 0 : index
    %4 = vector.load %arg3[%c0_3, %c0_4] : memref<22x16xf32, #tpu.memory_space<vmem>>, vector<22x16xf32>
    %5 = vector.extract_strided_slice %4 {offsets = [0, 0], sizes = [16, 16], strides = [1, 1]} : vector<22x16xf32> to vector<16x16xf32>
    %6 = vector.extract_strided_slice %4 {offsets = [16, 0], sizes = [1, 16], strides = [1, 1]} : vector<22x16xf32> to vector<1x16xf32>
    %7 = vector.extract_strided_slice %4 {offsets = [17, 0], sizes = [1, 16], strides = [1, 1]} : vector<22x16xf32> to vector<1x16xf32>
    %8 = vector.extract_strided_slice %4 {offsets = [18, 0], sizes = [2, 16], strides = [1, 1]} : vector<22x16xf32> to vector<2x16xf32>
    %9 = vector.extract_strided_slice %4 {offsets = [20, 0], sizes = [2, 16], strides = [1, 1]} : vector<22x16xf32> to vector<2x16xf32>
    %10 = vector.shape_cast %6 : vector<1x16xf32> to vector<1x16x1xf32>
    %11 = vector.broadcast %10 : vector<1x16x1xf32> to vector<2x16x64xf32>
    %12 = arith.mulf %0, %11 : vector<2x16x64xf32>
    %cst = arith.constant dense<0.000000e+00> : vector<2x64xf32>
    %13 = vector.multi_reduction <add>, %12, %cst [1] : vector<2x16x64xf32> to vector<2x64xf32>
    %cst_5 = arith.constant dense<0xFF800000> : vector<2xf32>
    %14 = vector.multi_reduction <maximumf>, %13, %cst_5 [1] : vector<2x64xf32> to vector<2xf32>
    %15 = vector.shape_cast %14 : vector<2xf32> to vector<2x1xf32>
    %16 = vector.broadcast %15 : vector<2x1xf32> to vector<2x64xf32>
    %17 = arith.subf %13, %16 : vector<2x64xf32>
    %18 = math.exp %17 : vector<2x64xf32>
    %cst_6 = arith.constant dense<0.000000e+00> : vector<2xf32>
    %19 = vector.multi_reduction <add>, %18, %cst_6 [1] : vector<2x64xf32> to vector<2xf32>
    %20 = vector.shape_cast %19 : vector<2xf32> to vector<2x1xf32>
    %21 = tpu.reciprocal %20 {approx = true} : vector<2x1xf32> -> vector<2x1xf32>
    %22 = vector.broadcast %21 : vector<2x1xf32> to vector<2x64xf32>
    %23 = arith.mulf %18, %22 : vector<2x64xf32>
    %24 = vector.shape_cast %23 : vector<2x64xf32> to vector<2x1x64xf32>
    %25 = vector.broadcast %24 : vector<2x1x64xf32> to vector<2x16x64xf32>
    %26 = arith.mulf %0, %25 : vector<2x16x64xf32>
    %cst_7 = arith.constant dense<0.000000e+00> : vector<2x16xf32>
    %27 = vector.multi_reduction <add>, %26, %cst_7 [2] : vector<2x16x64xf32> to vector<2x16xf32>
    %28 = vector.shape_cast %27 : vector<2x16xf32> to vector<2x1x16xf32>
    %29 = vector.shape_cast %8 : vector<2x16xf32> to vector<1x2x16xf32>
    %30 = vector.broadcast %28 : vector<2x1x16xf32> to vector<2x2x16xf32>
    %31 = vector.broadcast %29 : vector<1x2x16xf32> to vector<2x2x16xf32>
    %32 = arith.mulf %30, %31 : vector<2x2x16xf32>
    %cst_8 = arith.constant dense<0.000000e+00> : vector<2x2xf32>
    %33 = vector.multi_reduction <add>, %32, %cst_8 [2] : vector<2x2x16xf32> to vector<2x2xf32>
    %cst_9 = arith.constant 0.000000e+00 : f32
    %34 = vector.broadcast %cst_9 : f32 to vector<2x2xf32>
    %35 = arith.maximumf %33, %34 : vector<2x2xf32>
    %cst_10 = arith.constant dense<0.000000e+00> : vector<2x16xf32>
    %36 = tpu.matmul %35, %9, %cst_10 {dimension_numbers = #tpu.dot_dimension_numbers<[1], [0], [0], [1], [0, 0, 1, 1], [], []>} : vector<2x2xf32>, vector<2x16xf32>, vector<2x16xf32> -> vector<2x16xf32>
    %cst_11 = arith.constant 0.000000e+00 : f32
    %37 = vector.broadcast %cst_11 : f32 to vector<2x16xf32>
    %38 = arith.subf %37, %36 : vector<2x16xf32>
    %39 = math.exp %38 : vector<2x16xf32>
    %cst_12 = arith.constant 1.000000e+00 : f32
    %40 = vector.broadcast %cst_12 : f32 to vector<2x16xf32>
    %41 = arith.addf %40, %39 : vector<2x16xf32>
    %42 = tpu.reciprocal %41 {approx = true} : vector<2x16xf32> -> vector<2x16xf32>
    %43 = vector.extract_strided_slice %0 {offsets = [0, 0, 0], sizes = [1, 16, 64], strides = [1, 1, 1]} : vector<2x16x64xf32> to vector<1x16x64xf32>
    %44 = vector.shape_cast %43 : vector<1x16x64xf32> to vector<16x64xf32>
    %45 = tpu.transpose %44, [1, 0] : vector<16x64xf32> -> vector<64x16xf32>
    %46 = vector.extract_strided_slice %0 {offsets = [1, 0, 0], sizes = [1, 16, 64], strides = [1, 1, 1]} : vector<2x16x64xf32> to vector<1x16x64xf32>
    %47 = vector.shape_cast %46 : vector<1x16x64xf32> to vector<16x64xf32>
    %48 = tpu.transpose %47, [1, 0] : vector<16x64xf32> -> vector<64x16xf32>
    %49 = tpu.concatenate %45, %48 in 0 : vector<64x16xf32>, vector<64x16xf32> -> vector<128x16xf32>
    %cst_13 = arith.constant dense<0.000000e+00> : vector<128x16xf32>
    %50 = tpu.matmul %49, %5, %cst_13 {dimension_numbers = #tpu.dot_dimension_numbers<[1], [0], [0], [1], [0, 0, 1, 1], [], []>} : vector<128x16xf32>, vector<16x16xf32>, vector<128x16xf32> -> vector<128x16xf32>
    %51 = vector.shape_cast %50 : vector<128x16xf32> to vector<2x64x16xf32>
    %52 = vector.shape_cast %42 : vector<2x16xf32> to vector<2x1x16xf32>
    %53 = vector.broadcast %52 : vector<2x1x16xf32> to vector<2x64x16xf32>
    %54 = arith.mulf %51, %53 : vector<2x64x16xf32>
    %55 = vector.shape_cast %7 : vector<1x16xf32> to vector<1x1x16xf32>
    %56 = vector.broadcast %55 : vector<1x1x16xf32> to vector<2x64x16xf32>
    %57 = arith.mulf %54, %56 : vector<2x64x16xf32>
    %cst_14 = arith.constant dense<0.000000e+00> : vector<2x64xf32>
    %58 = vector.multi_reduction <add>, %57, %cst_14 [2] : vector<2x64x16xf32> to vector<2x64xf32>
    %c0_15 = arith.constant 0 : index
    %c0_16 = arith.constant 0 : index
    %59 = vector.load %arg4[%c0_15, %c0_16] : memref<9x64xf32, #tpu.memory_space<vmem>>, vector<9x64xf32>
    %cst_17 = arith.constant 0.000000e+00 : f32
    %60 = vector.broadcast %cst_17 : f32 to vector<2x64xf32>
    %61 = vector.extract_strided_slice %59 {offsets = [0, 0], sizes = [1, 64], strides = [1, 1]} : vector<9x64xf32> to vector<1x64xf32>
    %62 = vector.extract_strided_slice %58 {offsets = [0, 55], sizes = [2, 9], strides = [1, 1]} : vector<2x64xf32> to vector<2x9xf32>
    %63 = vector.extract_strided_slice %58 {offsets = [0, 0], sizes = [2, 55], strides = [1, 1]} : vector<2x64xf32> to vector<2x55xf32>
    %64 = tpu.concatenate %62, %63 in 1 : vector<2x9xf32>, vector<2x55xf32> -> vector<2x64xf32>
    %65 = vector.broadcast %61 : vector<1x64xf32> to vector<2x64xf32>
    %66 = arith.mulf %65, %64 : vector<2x64xf32>
    %67 = arith.addf %60, %66 : vector<2x64xf32>
    %68 = vector.extract_strided_slice %59 {offsets = [1, 0], sizes = [1, 64], strides = [1, 1]} : vector<9x64xf32> to vector<1x64xf32>
    %69 = vector.extract_strided_slice %58 {offsets = [0, 56], sizes = [2, 8], strides = [1, 1]} : vector<2x64xf32> to vector<2x8xf32>
    %70 = vector.extract_strided_slice %58 {offsets = [0, 0], sizes = [2, 56], strides = [1, 1]} : vector<2x64xf32> to vector<2x56xf32>
    %71 = tpu.concatenate %69, %70 in 1 : vector<2x8xf32>, vector<2x56xf32> -> vector<2x64xf32>
    %72 = vector.broadcast %68 : vector<1x64xf32> to vector<2x64xf32>
    %73 = arith.mulf %72, %71 : vector<2x64xf32>
    %74 = arith.addf %67, %73 : vector<2x64xf32>
    %75 = vector.extract_strided_slice %59 {offsets = [2, 0], sizes = [1, 64], strides = [1, 1]} : vector<9x64xf32> to vector<1x64xf32>
    %76 = vector.extract_strided_slice %58 {offsets = [0, 57], sizes = [2, 7], strides = [1, 1]} : vector<2x64xf32> to vector<2x7xf32>
    %77 = vector.extract_strided_slice %58 {offsets = [0, 0], sizes = [2, 57], strides = [1, 1]} : vector<2x64xf32> to vector<2x57xf32>
    %78 = tpu.concatenate %76, %77 in 1 : vector<2x7xf32>, vector<2x57xf32> -> vector<2x64xf32>
    %79 = vector.broadcast %75 : vector<1x64xf32> to vector<2x64xf32>
    %80 = arith.mulf %79, %78 : vector<2x64xf32>
    %81 = arith.addf %74, %80 : vector<2x64xf32>
    %82 = vector.extract_strided_slice %59 {offsets = [3, 0], sizes = [1, 64], strides = [1, 1]} : vector<9x64xf32> to vector<1x64xf32>
    %83 = vector.extract_strided_slice %58 {offsets = [0, 63], sizes = [2, 1], strides = [1, 1]} : vector<2x64xf32> to vector<2x1xf32>
    %84 = vector.extract_strided_slice %58 {offsets = [0, 0], sizes = [2, 63], strides = [1, 1]} : vector<2x64xf32> to vector<2x63xf32>
    %85 = tpu.concatenate %83, %84 in 1 : vector<2x1xf32>, vector<2x63xf32> -> vector<2x64xf32>
    %86 = vector.broadcast %82 : vector<1x64xf32> to vector<2x64xf32>
    %87 = arith.mulf %86, %85 : vector<2x64xf32>
    %88 = arith.addf %81, %87 : vector<2x64xf32>
    %89 = vector.extract_strided_slice %59 {offsets = [4, 0], sizes = [1, 64], strides = [1, 1]} : vector<9x64xf32> to vector<1x64xf32>
    %90 = vector.broadcast %89 : vector<1x64xf32> to vector<2x64xf32>
    %91 = arith.mulf %90, %58 : vector<2x64xf32>
    %92 = arith.addf %88, %91 : vector<2x64xf32>
    %93 = vector.extract_strided_slice %59 {offsets = [5, 0], sizes = [1, 64], strides = [1, 1]} : vector<9x64xf32> to vector<1x64xf32>
    %94 = vector.extract_strided_slice %58 {offsets = [0, 1], sizes = [2, 63], strides = [1, 1]} : vector<2x64xf32> to vector<2x63xf32>
    %95 = vector.extract_strided_slice %58 {offsets = [0, 0], sizes = [2, 1], strides = [1, 1]} : vector<2x64xf32> to vector<2x1xf32>
    %96 = tpu.concatenate %94, %95 in 1 : vector<2x63xf32>, vector<2x1xf32> -> vector<2x64xf32>
    %97 = vector.broadcast %93 : vector<1x64xf32> to vector<2x64xf32>
    %98 = arith.mulf %97, %96 : vector<2x64xf32>
    %99 = arith.addf %92, %98 : vector<2x64xf32>
    %100 = vector.extract_strided_slice %59 {offsets = [6, 0], sizes = [1, 64], strides = [1, 1]} : vector<9x64xf32> to vector<1x64xf32>
    %101 = vector.extract_strided_slice %58 {offsets = [0, 7], sizes = [2, 57], strides = [1, 1]} : vector<2x64xf32> to vector<2x57xf32>
    %102 = vector.extract_strided_slice %58 {offsets = [0, 0], sizes = [2, 7], strides = [1, 1]} : vector<2x64xf32> to vector<2x7xf32>
    %103 = tpu.concatenate %101, %102 in 1 : vector<2x57xf32>, vector<2x7xf32> -> vector<2x64xf32>
    %104 = vector.broadcast %100 : vector<1x64xf32> to vector<2x64xf32>
    %105 = arith.mulf %104, %103 : vector<2x64xf32>
    %106 = arith.addf %99, %105 : vector<2x64xf32>
    %107 = vector.extract_strided_slice %59 {offsets = [7, 0], sizes = [1, 64], strides = [1, 1]} : vector<9x64xf32> to vector<1x64xf32>
    %108 = vector.extract_strided_slice %58 {offsets = [0, 8], sizes = [2, 56], strides = [1, 1]} : vector<2x64xf32> to vector<2x56xf32>
    %109 = vector.extract_strided_slice %58 {offsets = [0, 0], sizes = [2, 8], strides = [1, 1]} : vector<2x64xf32> to vector<2x8xf32>
    %110 = tpu.concatenate %108, %109 in 1 : vector<2x56xf32>, vector<2x8xf32> -> vector<2x64xf32>
    %111 = vector.broadcast %107 : vector<1x64xf32> to vector<2x64xf32>
    %112 = arith.mulf %111, %110 : vector<2x64xf32>
    %113 = arith.addf %106, %112 : vector<2x64xf32>
    %114 = vector.extract_strided_slice %59 {offsets = [8, 0], sizes = [1, 64], strides = [1, 1]} : vector<9x64xf32> to vector<1x64xf32>
    %115 = vector.extract_strided_slice %58 {offsets = [0, 9], sizes = [2, 55], strides = [1, 1]} : vector<2x64xf32> to vector<2x55xf32>
    %116 = vector.extract_strided_slice %58 {offsets = [0, 0], sizes = [2, 9], strides = [1, 1]} : vector<2x64xf32> to vector<2x9xf32>
    %117 = tpu.concatenate %115, %116 in 1 : vector<2x55xf32>, vector<2x9xf32> -> vector<2x64xf32>
    %118 = vector.broadcast %114 : vector<1x64xf32> to vector<2x64xf32>
    %119 = arith.mulf %118, %117 : vector<2x64xf32>
    %120 = arith.addf %113, %119 : vector<2x64xf32>
    %121 = vector.shape_cast %120 : vector<2x64xf32> to vector<1x2x64xf32>
    %cst_18 = arith.constant dense<0.000000e+00> : vector<1xf32>
    %122 = vector.multi_reduction <add>, %121, %cst_18 [1, 2] : vector<1x2x64xf32> to vector<1xf32>
    %123 = vector.shape_cast %122 : vector<1xf32> to vector<1x1x1xf32>
    %124 = vector.extract %123[0, 0, 0] : f32 from vector<1x1x1xf32>
    %cst_19 = arith.constant 1.280000e+02 : f32
    %125 = arith.divf %124, %cst_19 : f32
    %126 = vector.broadcast %125 : f32 to vector<2x64xf32>
    %127 = arith.subf %120, %126 : vector<2x64xf32>
    %128 = arith.mulf %127, %127 : vector<2x64xf32>
    %129 = vector.shape_cast %128 : vector<2x64xf32> to vector<1x2x64xf32>
    %cst_20 = arith.constant dense<0.000000e+00> : vector<1xf32>
    %130 = vector.multi_reduction <add>, %129, %cst_20 [1, 2] : vector<1x2x64xf32> to vector<1xf32>
    %131 = vector.shape_cast %130 : vector<1xf32> to vector<1x1x1xf32>
    %132 = vector.extract %131[0, 0, 0] : f32 from vector<1x1x1xf32>
    %cst_21 = arith.constant 1.280000e+02 : f32
    %133 = arith.divf %132, %cst_21 : f32
    %134 = vector.broadcast %125 : f32 to vector<2x64xf32>
    %135 = arith.subf %120, %134 : vector<2x64xf32>
    %cst_22 = arith.constant 9.99999974E-6 : f32
    %136 = arith.addf %133, %cst_22 : f32
    %137 = math.rsqrt %136 : f32
    %138 = vector.broadcast %137 : f32 to vector<2x64xf32>
    %139 = arith.mulf %135, %138 : vector<2x64xf32>
    %140 = vector.broadcast %2 : f32 to vector<2x64xf32>
    %141 = arith.mulf %139, %140 : vector<2x64xf32>
    %142 = vector.broadcast %3 : f32 to vector<2x64xf32>
    %143 = arith.addf %141, %142 : vector<2x64xf32>
    %cst_23 = arith.constant 0.000000e+00 : f32
    %144 = vector.broadcast %cst_23 : f32 to vector<2x64xf32>
    %145 = arith.subf %144, %143 : vector<2x64xf32>
    %146 = math.exp %145 : vector<2x64xf32>
    %cst_24 = arith.constant 1.000000e+00 : f32
    %147 = vector.broadcast %cst_24 : f32 to vector<2x64xf32>
    %148 = arith.addf %147, %146 : vector<2x64xf32>
    %149 = tpu.reciprocal %148 {approx = true} : vector<2x64xf32> -> vector<2x64xf32>
    %150 = arith.mulf %58, %149 : vector<2x64xf32>
    %151 = vector.broadcast %1 : f32 to vector<2x64xf32>
    %152 = arith.mulf %151, %150 : vector<2x64xf32>
    %153 = tpu.concatenate %152, %152, %152, %152, %152, %152, %152, %152, %152, %152, %152, %152, %152, %152, %152, %152 in 1 : vector<2x64xf32>, vector<2x64xf32>, vector<2x64xf32>, vector<2x64xf32>, vector<2x64xf32>, vector<2x64xf32>, vector<2x64xf32>, vector<2x64xf32>, vector<2x64xf32>, vector<2x64xf32>, vector<2x64xf32>, vector<2x64xf32>, vector<2x64xf32>, vector<2x64xf32>, vector<2x64xf32>, vector<2x64xf32> -> vector<2x1024xf32>
    %c0_25 = arith.constant 0 : index
    %c0_26 = arith.constant 0 : index
    %154 = vector.load %arg2[%c0_25, %c0_26] : memref<2x1024xf32, #tpu.memory_space<vmem>>, vector<2x1024xf32>
    %155 = arith.addf %153, %154 : vector<2x1024xf32>
    %c0_27 = arith.constant 0 : index
    %c0_28 = arith.constant 0 : index
    %156 = vector.load %arg5[%c0_27, %c0_28] : memref<2x1024xf32, #tpu.memory_space<vmem>>, vector<2x1024xf32>
    tpu.vector_store %arg5[%c0_27, %c0_28], %155 {strides = array<i32>} : memref<2x1024xf32, #tpu.memory_space<vmem>>, vector<2x1024xf32>,
    %cst_29 = arith.constant dense<0x7F800000> : vector<2xf32>
    %157 = vector.multi_reduction <minimumf>, %152, %cst_29 [1] : vector<2x64xf32> to vector<2xf32>
    %158 = vector.shape_cast %157 : vector<2xf32> to vector<2x1xf32>
    %cst_30 = arith.constant dense<0xFF800000> : vector<2xf32>
    %159 = vector.multi_reduction <maximumf>, %152, %cst_30 [1] : vector<2x64xf32> to vector<2xf32>
    %160 = vector.shape_cast %159 : vector<2xf32> to vector<2x1xf32>
    %161 = arith.subf %160, %158 : vector<2x1xf32>
    %cst_31 = arith.constant 0.000000e+00 : f32
    %162 = vector.broadcast %cst_31 : f32 to vector<2x1xf32>
    %163 = arith.cmpf oeq, %161, %162 : vector<2x1xf32>
    %cst_32 = arith.constant 9.99999974E-6 : f32
    %164 = vector.broadcast %cst_32 : f32 to vector<2x1xf32>
    %165 = arith.select %163, %164, %161 : vector<2x1xi1>, vector<2x1xf32>
    %166 = vector.broadcast %158 : vector<2x1xf32> to vector<2x64xf32>
    %167 = arith.subf %152, %166 : vector<2x64xf32>
    %168 = tpu.reciprocal %165 {approx = true} : vector<2x1xf32> -> vector<2x1xf32>
    %169 = vector.broadcast %168 : vector<2x1xf32> to vector<2x64xf32>
    %170 = arith.mulf %167, %169 : vector<2x64xf32>
    %171 = vector.extract_strided_slice %170 {offsets = [0, 0], sizes = [1, 64], strides = [1, 1]} : vector<2x64xf32> to vector<1x64xf32>
    %172 = vector.extract_strided_slice %170 {offsets = [1, 0], sizes = [1, 64], strides = [1, 1]} : vector<2x64xf32> to vector<1x64xf32>
    %173 = tpu.concatenate %171, %172 in 1 : vector<1x64xf32>, vector<1x64xf32> -> vector<1x128xf32>
    %c0_33 = arith.constant 0 : index
    %c0_34 = arith.constant 0 : index
    %174 = vector.load %arg6[%c0_33, %c0_34] : memref<1x128xf32, #tpu.memory_space<vmem>>, vector<1x128xf32>
    tpu.vector_store %arg6[%c0_33, %c0_34], %173 {strides = array<i32>} : memref<1x128xf32, #tpu.memory_space<vmem>>, vector<1x128xf32>,
    return
  }
}

</mosaic_0001>

<llo_original>
// kernel: tpu_custom_call.1
$region0: #{tpu_custom_call.1}
  #allocation0 [shape = 'u32[]', space=smem, size = 0x4, offset = 0x4, fixed_abs, tag = 'smem constant byte address 0x4 - core index']
  #allocation1 [shape = 'u32[144,128]{1,0:T(1,128)}', space=vmem, size = 0x12000, scoped, tag = 'internal scratch']
  %s0 = inlined_call_operand.vmem [shape: f32[3], index: 0, kind: input, shape index: {}]
  %s1 = inlined_call_operand.vmem [shape: f32[2,16,64], index: 1, kind: input, shape index: {}]
  %s2 = inlined_call_operand.hbm [shape: f32[2,1024], index: 2, kind: input, shape index: {}]
  %s3 = inlined_call_operand.vmem [shape: f32[22,16], index: 3, kind: input, shape index: {}]
  %s4 = inlined_call_operand.vmem [shape: f32[9,64], index: 4, kind: input, shape index: {}]
  %s5 = inlined_call_operand.hbm [shape: f32[2,1024], index: 5, kind: output, shape index: {0}]
  %s6 = inlined_call_operand.hbm [shape: f32[1,128], index: 6, kind: output, shape index: {1}]
  %7 = xla_tuple %s5, %s6
  %s8 = sld [smem:[#allocation0]]
  $region46: #{tpu_custom_call.1} parent=0
    _
  %s10 = ssub.s32 1, %s8
  %s11 = scalar_select 0, %s10, %s8
  $region1: #{tpu_custom_call.1} parent=0
    #allocation2 [shape = 'u8[512]{0}', space=smem, size = 0x200, scoped, tag = 'input window, operand 0, single buffered']
    #allocation3 [shape = 's32[1]{0}', space=sflag, size = 0x4, scoped, tag = 'scoped memory for tpu_custom_call.1']
    #allocation4 [shape = 's32[1]{0}', space=sflag, size = 0x4, scoped, tag = 'scoped memory for tpu_custom_call.1']
    #allocation5 [shape = 's32[1]{0}', space=sflag, size = 0x4, scoped, tag = 'scoped memory for tpu_custom_call.1']
    #allocation6 [shape = 'u8[8192]{0}', space=vmem, size = 0x2000, scoped, tag = 'input window, operand 2, single buffered']
    #allocation7 [shape = 'u8[8192]{0}', space=vmem, size = 0x2000, scoped, tag = 'output window, operand 0, single buffered']
    #allocation8 [shape = 'u8[512]{0}', space=vmem, size = 0x400, scoped, tag = 'output window, operand 1, single buffered']
    #allocation9 [shape = 's32[1]{0}', space=sflag, size = 0x4, scoped, tag = 'scoped memory for tpu_custom_call.1']
    %12 = vsyncpa [#allocation5], 0
    %13 = vsyncpa [#allocation3], 0
    %14 = vsyncpa [#allocation4], 0
    %15 = vsyncpa [#allocation9], 0
    // Predicated region
    $region2: #{tpu_custom_call.1} parent=1 // pred_check
      _
    $region3: #{tpu_custom_call.1} parent=1 // pred_check_branch
      %17 = sbr.rel (0) target = $region5
    $region4: #{tpu_custom_call.1} parent=1 // pred_region
      %s19 = ssub.s32 16, 16
      %20 = vsyncadd [#allocation5], %s19
      %s22 = sshll.u32 %s0, 4
      %s23 = int_to_ptr.vmem [resolvable:$true] %s22
      %25 = dma.vmem_to_smem %s23, 16, [#allocation2], [#allocation5]
    $region5: #{tpu_custom_call.1} parent=1 // pred_fallthru
      _
    // Predicated region
    $region6: #{tpu_custom_call.1} parent=1 // pred_check
      _
    $region7: #{tpu_custom_call.1} parent=1 // pred_check_branch
      %27 = sbr.rel (0) target = $region9
    $region8: #{tpu_custom_call.1} parent=1 // pred_region
      _
    $region9: #{tpu_custom_call.1} parent=1 // pred_fallthru
      _
    // Predicated region
    $region10: #{tpu_custom_call.1} parent=1 // pred_check
      _
    $region11: #{tpu_custom_call.1} parent=1 // pred_check_branch
      %29 = sbr.rel (0) target = $region13
    $region12: #{tpu_custom_call.1} parent=1 // pred_region
      %s31 = ssub.s32 256, 256
      %32 = vsyncadd [#allocation3], %s31
      %s34 = sshll.u32 [#allocation6], 4
      %s35 = int_to_ptr.vmem [resolvable:$true] %s34
      %37 = dma.hbm_to_vmem [thread:$0]  %s2, 256, %s35, [#allocation3]
    $region13: #{tpu_custom_call.1} parent=1 // pred_fallthru
      _
    // Predicated region
    $region14: #{tpu_custom_call.1} parent=1 // pred_check
      _
    $region15: #{tpu_custom_call.1} parent=1 // pred_check_branch
      %39 = sbr.rel (0) target = $region17
    $region16: #{tpu_custom_call.1} parent=1 // pred_region
      _
    $region17: #{tpu_custom_call.1} parent=1 // pred_fallthru
      _
    // Predicated region
    $region18: #{tpu_custom_call.1} parent=1 // pred_check
      _
    $region19: #{tpu_custom_call.1} parent=1 // pred_check_branch
      %41 = sbr.rel (0) target = $region21
    $region20: #{tpu_custom_call.1} parent=1 // pred_region
      _
    $region21: #{tpu_custom_call.1} parent=1 // pred_fallthru
      _
    // Predicated region
    $region22: #{tpu_custom_call.1} parent=1 // pred_check
      _
    $region23: #{tpu_custom_call.1} parent=1 // pred_check_branch
      %43 = sbr.rel (0) target = $region25
    $region24: #{tpu_custom_call.1} parent=1 // pred_region
      %44 = dma.done [#allocation5], 16
    $region25: #{tpu_custom_call.1} parent=1 // pred_fallthru
      _
    // Predicated region
    $region26: #{tpu_custom_call.1} parent=1 // pred_check
      _
    $region27: #{tpu_custom_call.1} parent=1 // pred_check_branch
      %46 = sbr.rel (0) target = $region29
    $region28: #{tpu_custom_call.1} parent=1 // pred_region
      %47 = dma.done [#allocation3], 256
    $region29: #{tpu_custom_call.1} parent=1 // pred_fallthru
      _
    %48 = sfence
    %v49 = vld [vmem:[%s1] sm:$0xff]
    %v50 = vld [vmem:[%s1 + $0x8] sm:$0xff]
    %v51 = vld [vmem:[%s1 + $0x10] sm:$0xff]
    %v52 = vld [vmem:[%s1 + $0x18] sm:$0xff]
    %s53 = sld [smem:[#allocation2]]
    %s54 = sld [smem:[#allocation2 + $0x1]]
    %s55 = sld [smem:[#allocation2 + $0x2]]
    %v56 = vld [vmem:[%s3] sm:$0xff]
    %v57 = vld [vmem:[%s3 + $0x8] sm:$0xff]
    %v58 = vld [vmem:[%s3 + $0x10] sm:$0x3f]
    %v59 = vlaneseq
    %v60 = vshrl.u32 %v59, 7
    %v61 = vsub.s32 0, %v60
    %v62 = vrot.slane %v58, %v61
    %64 = vbcast.lane.b32.xlu0 %v62, 256
    %v65 = vpop.permute.xlu0 %64
    %s67 = sor.u32 256, 8
    %68 = vbcast.lane.b32.xlu0 %v62, %s67
    %v69 = vpop.permute.xlu0 %68
    %v70 = vmul.f32 %v49, %v65
    %v71 = vmul.f32 %v50, %v69
    %v72 = vmul.f32 %v51, %v65
    %v73 = vmul.f32 %v52, %v69
    %vm74 = vcmask 523264
    %v75 = vsel %vm74, %v70, 0.0
    %v76 = vsel %vm74, %v71, 0.0
    %v77 = vadd.f32 %v75, %v76
    %v78 = vrot.slane %v77, 4
    %v79 = vadd.f32 %v77, %v78
    %v80 = vrot.slane %v79, 2
    %v81 = vadd.f32 %v79, %v80
    %v82 = vrot.slane %v81, 1
    %v83 = vadd.f32 %v81, %v82
    %v84 = vsel %vm74, %v72, 0.0
    %v85 = vsel %vm74, %v73, 0.0
    %v86 = vadd.f32 %v84, %v85
    %v87 = vrot.slane %v86, 4
    %v88 = vadd.f32 %v86, %v87
    %v89 = vrot.slane %v88, 2
    %v90 = vadd.f32 %v88, %v89
    %v91 = vrot.slane %v90, 1
    %v92 = vadd.f32 %v90, %v91
    %vm95 = vcmask 1041409
    %v96 = vsel %vm95, %v92, %v83
    %vm98 = vcmask 517120
    %v99 = vsel %vm98, %v96, -inf
    %100 = vmax.xlane.f32.xlu0 %v99
    %v101 = vpop.xlane.xlu0 %100
    %v103 = vrot.slane %v101, 1
    %v106 = vsub.f32 %v83, %v101
    %v107 = vsub.f32 %v92, %v103
    %v108 = vmul.f32 %v106, 1.442695
    %v109 = vpow.pop %v108
    %v110 = vmul.f32 %v107, 1.442695
    %v111 = vpow.pop %v110
    %v114 = vrot.slane %v111, 7
    %v115 = vsel %vm95, %v114, %v109
    %v117 = vsel %vm98, %v115, 0.0
    %118 = vadd.xlane.f32.xlu0 %v117
    %v119 = vpop.xlane.xlu0 %118
    %v120 = vrcp.pop %v119
    %v122 = vrot.slane %v120, 1
    %v125 = vmul.f32 %v109, %v120
    %v126 = vmul.f32 %v111, %v122
    %v127 = vlaneseq
    %v128 = vshrl.u32 %v127, 7
    %v129 = vsub.s32 0, %v128
    %v130 = vrot.slane %v125, %v129
    %v131 = vlaneseq
    %v132 = vshrl.u32 %v131, 7
    %v133 = vsub.s32 0, %v132
    %v134 = vrot.slane %v126, %v133
    %v135 = vmul.f32 %v49, %v130
    %v136 = vmul.f32 %v50, %v130
    %v137 = vmul.f32 %v51, %v134
    %v138 = vmul.f32 %v52, %v134
    %v139 = vsel %vm74, %v135, 0.0
    %140 = vadd.xlane.f32.xlu0 %v139
    %v141 = vpop.xlane.xlu0 %140
    %v142 = vsel %vm74, %v136, 0.0
    %143 = vadd.xlane.f32.xlu0 %v142
    %v144 = vpop.xlane.xlu0 %143
    %v145 = vsel %vm74, %v137, 0.0
    %146 = vadd.xlane.f32.xlu0 %v145
    %v147 = vpop.xlane.xlu0 %146
    %v148 = vsel %vm74, %v138, 0.0
    %149 = vadd.xlane.f32.xlu0 %v148
    %v150 = vpop.xlane.xlu0 %149
    %v152 = vlaneseq
    %v153 = vshrl.u32 %v152, 7
    %v154 = vsub.s32 2, %v153
    %v155 = vrot.slane %v58, %v154
    %157 = vbcast.lane.b32.xlu0 %v155, 256
    %v158 = vpop.permute.xlu0 %157
    %s160 = sor.u32 256, 8
    %161 = vbcast.lane.b32.xlu0 %v155, %s160
    %v162 = vpop.permute.xlu0 %161
    %v163 = vlaneseq
    %v164 = vshrl.u32 %v163, 7
    %v165 = vsub.s32 3, %v164
    %v166 = vrot.slane %v58, %v165
    %168 = vbcast.lane.b32.xlu0 %v166, 256
    %v169 = vpop.permute.xlu0 %168
    %s171 = sor.u32 256, 8
    %172 = vbcast.lane.b32.xlu0 %v166, %s171
    %v173 = vpop.permute.xlu0 %172
    %v178 = vmul.f32 %v141, %v158
    %v179 = vmul.f32 %v144, %v162
    %v180 = vmul.f32 %v141, %v169
    %v181 = vmul.f32 %v144, %v173
    %v182 = vmul.f32 %v147, %v158
    %v183 = vmul.f32 %v150, %v162
    %v184 = vmul.f32 %v147, %v169
    %v185 = vmul.f32 %v150, %v173
    %194 = vset.pattern.permute.xlu0 0
    %195 = vperm.xlu0 %194, %v178
    %v196 = vpop.permute.xlu0 %195
    %197 = vset.pattern.permute.xlu0 0
    %198 = vperm.xlu0 %197, %v179
    %v199 = vpop.permute.xlu0 %198
    %200 = vset.pattern.permute.xlu0 0
    %201 = vperm.xlu0 %200, %v180
    %v202 = vpop.permute.xlu0 %201
    %203 = vset.pattern.permute.xlu0 0
    %204 = vperm.xlu0 %203, %v181
    %v205 = vpop.permute.xlu0 %204
    %206 = vset.pattern.permute.xlu0 0
    %207 = vperm.xlu0 %206, %v182
    %v208 = vpop.permute.xlu0 %207
    %209 = vset.pattern.permute.xlu0 0
    %210 = vperm.xlu0 %209, %v183
    %v211 = vpop.permute.xlu0 %210
    %212 = vset.pattern.permute.xlu0 0
    %213 = vperm.xlu0 %212, %v184
    %v214 = vpop.permute.xlu0 %213
    %215 = vset.pattern.permute.xlu0 0
    %216 = vperm.xlu0 %215, %v185
    %v217 = vpop.permute.xlu0 %216
    %v218 = vlaneseq
    %v219 = vand.u32 %v218, 127
    %v220 = vlaneseq
    %v221 = vshrl.u32 %v220, 7
    %v222 = vsub.s32 %v219, %v221
    %v223 = vrot.slane %v196, %v222
    %v224 = vadd.s32 %v219, 4294967288
    %v225 = vlaneseq
    %v226 = vshrl.u32 %v225, 7
    %v227 = vsub.s32 %v224, %v226
    %v228 = vrot.slane %v199, %v227
    %vm229 = vcmask 130112
    %v230 = vsel %vm229, %v228, %v223
    %v231 = vlaneseq
    %v232 = vshrl.u32 %v231, 7
    %v233 = vsub.s32 %v219, %v232
    %v234 = vrot.slane %v202, %v233
    %v235 = vlaneseq
    %v236 = vshrl.u32 %v235, 7
    %v237 = vsub.s32 %v224, %v236
    %v238 = vrot.slane %v205, %v237
    %v239 = vsel %vm229, %v238, %v234
    %v240 = vlaneseq
    %v241 = vshrl.u32 %v240, 7
    %v242 = vsub.s32 %v219, %v241
    %v243 = vrot.slane %v208, %v242
    %v244 = vlaneseq
    %v245 = vshrl.u32 %v244, 7
    %v246 = vsub.s32 %v224, %v245
    %v247 = vrot.slane %v211, %v246
    %v248 = vsel %vm229, %v247, %v243
    %v249 = vlaneseq
    %v250 = vshrl.u32 %v249, 7
    %v251 = vsub.s32 %v219, %v250
    %v252 = vrot.slane %v214, %v251
    %v253 = vlaneseq
    %v254 = vshrl.u32 %v253, 7
    %v255 = vsub.s32 %v224, %v254
    %v256 = vrot.slane %v217, %v255
    %v257 = vsel %vm229, %v256, %v252
    %v258 = vsel %vm95, %v239, %v230
    %v259 = vsel %vm95, %v257, %v248
    %vm262 = vcmask 123904
    %v263 = vsel %vm262, %v258, 0.0
    %264 = vadd.xlane.f32.xlu0 %v263
    %v265 = vpop.xlane.xlu0 %264
    %v266 = vsel %vm262, %v259, 0.0
    %267 = vadd.xlane.f32.xlu0 %v266
    %v268 = vpop.xlane.xlu0 %267
    %v269 = vmax.f32 %v265, 0.0
    %v270 = vmax.f32 %v268, 0.0
    %v273 = vlaneseq
    %v274 = vshrl.u32 %v273, 7
    %v275 = vsub.s32 %v219, %v274
    %v276 = vrot.slane %v269, %v275
    %v277 = vlaneseq
    %v278 = vshrl.u32 %v277, 7
    %v279 = vsub.s32 %v219, %v278
    %v280 = vrot.slane %v270, %v279
    %v281 = vsel %vm95, %v280, %v276
    %v282 = vrot.slane %v58, 4
    %vm283 = vcmask 15360
    %v284 = vsel %vm283, %v281, 0
    %vm286 = vcmask 1041408
    %v287 = vsel %vm286, %v282, 0
    %289 = vmatprep.subr.mxu0 0.0
    %290 = vmatpush1.msra.mxu0 %v287
    %291 = vmatprep.subr.mxu0 0.0
    %292 = vmatpush1.msra.mxu0 0.0
    %293 = vmatprep.subr.mxu0 0.0
    %294 = vmatpush1.msra.mxu0 0.0
    %295 = vmatprep.subr.mxu0 0.0
    %296 = vmatpush1.msra.mxu0 0.0
    %297 = vmatprep.subr.mxu0 0.0
    %298 = vmatpush1.msra.mxu0 0.0
    %299 = vmatprep.subr.mxu0 0.0
    %300 = vmatpush1.msra.mxu0 0.0
    %301 = vmatprep.subr.mxu0 0.0
    %302 = vmatpush1.msra.mxu0 0.0
    %303 = vmatprep.subr.mxu0 0.0
    %304 = vmatpush1.msra.mxu0 0.0
    %305 = vmatprep.subr.mxu0 0.0
    %306 = vmatpush1.msra.mxu0 0.0
    %307 = vmatprep.subr.mxu0 0.0
    %308 = vmatpush1.msra.mxu0 0.0
    %309 = vmatprep.subr.mxu0 0.0
    %310 = vmatpush1.msra.mxu0 0.0
    %311 = vmatprep.subr.mxu0 0.0
    %312 = vmatpush1.msra.mxu0 0.0
    %313 = vmatprep.subr.mxu0 0.0
    %314 = vmatpush1.msra.mxu0 0.0
    %315 = vmatprep.subr.mxu0 0.0
    %316 = vmatpush1.msra.mxu0 0.0
    %317 = vmatprep.subr.mxu0 0.0
    %318 = vmatpush1.msra.mxu0 0.0
    %319 = vmatprep.subr.mxu0 0.0
    %320 = vmatpush1.msra.mxu0 0.0
    %321 = vmatprep.subr.mxu0 0.0
    %322 = vmatpush1.msra.mxu0 0.0
    %323 = vmatprep.subr.mxu0 0.0
    %324 = vmatpush1.msra.mxu0 0.0
    %325 = vmatprep.subr.mxu0 0.0
    %326 = vmatpush1.msra.mxu0 0.0
    %327 = vmatprep.subr.mxu0 0.0
    %328 = vmatpush1.msra.mxu0 0.0
    %329 = vmatprep.subr.mxu0 0.0
    %330 = vmatpush1.msra.mxu0 0.0
    %331 = vmatprep.subr.mxu0 0.0
    %332 = vmatpush1.msra.mxu0 0.0
    %333 = vmatprep.subr.mxu0 0.0
    %334 = vmatpush1.msra.mxu0 0.0
    %335 = vmatprep.subr.mxu0 0.0
    %336 = vmatpush1.msra.mxu0 0.0
    %337 = vmatprep.subr.mxu0 0.0
    %338 = vmatpush1.msra.mxu0 0.0
    %339 = vmatprep.subr.mxu0 0.0
    %340 = vmatpush1.msra.mxu0 0.0
    %341 = vmatprep.subr.mxu0 0.0
    %342 = vmatpush1.msra.mxu0 0.0
    %343 = vmatprep.subr.mxu0 0.0
    %344 = vmatpush1.msra.mxu0 0.0
    %345 = vmatprep.subr.mxu0 0.0
    %346 = vmatpush1.msra.mxu0 0.0
    %347 = vmatprep.subr.mxu0 0.0
    %348 = vmatpush1.msra.mxu0 0.0
    %349 = vmatprep.subr.mxu0 0.0
    %350 = vmatpush1.msra.mxu0 0.0
    %351 = vmatprep.subr.mxu0 0.0
    %352 = vmatpush1.msra.mxu0 0.0
    %353 = vmatprep.mubr.f32.mxu0 0.0
    %354 = vmatmul.mubr.f32.gmra.mrb[0].mxu0 %v284
    %v355 = vpop.f32.mrb[0].mxu0
    %v356 = vadd.f32 0.0, %v355
    %v357 = vpop.f32.mrb[0].mxu0
    %358 = vdwg.mxu0
    %v359 = vsub.f32 0.0, %v356
    %v360 = vmul.f32 %v359, 1.442695
    %v361 = vpow.pop %v360
    %v362 = vadd.f32 %v361, 1.0
    %v363 = vrcp.pop %v362
    %364 = vxpose.xlu0.b32.start [1/16] %v49, 128
    %365 = vxpose.xlu0.b32.cont [2/16] %v50, 128
    %366 = vxpose.xlu0.b32.cont [3/16] 0.0, 128
    %367 = vxpose.xlu0.b32.cont [4/16] 0.0, 128
    %368 = vxpose.xlu0.b32.cont [5/16] 0.0, 128
    %369 = vxpose.xlu0.b32.cont [6/16] 0.0, 128
    %370 = vxpose.xlu0.b32.cont [7/16] 0.0, 128
    %371 = vxpose.xlu0.b32.cont [8/16] 0.0, 128
    %372 = vxpose.xlu0.b32.cont [9/16] 0.0, 128
    %373 = vxpose.xlu0.b32.cont [10/16] 0.0, 128
    %374 = vxpose.xlu0.b32.cont [11/16] 0.0, 128
    %375 = vxpose.xlu0.b32.cont [12/16] 0.0, 128
    %376 = vxpose.xlu0.b32.cont [13/16] 0.0, 128
    %377 = vxpose.xlu0.b32.cont [14/16] 0.0, 128
    %378 = vxpose.xlu0.b32.cont [15/16] 0.0, 128
    %379 = vxpose.xlu0.b32.end [16/16] 0.0, 128
    %v380 = vpop.trf.xlu0
    %v381 = vpop.trf.xlu0
    %v382 = vpop.trf.xlu0
    %v383 = vpop.trf.xlu0
    %v384 = vpop.trf.xlu0
    %v385 = vpop.trf.xlu0
    %v386 = vpop.trf.xlu0
    %v387 = vpop.trf.xlu0
    %v388 = vpop.trf.xlu0
    %v389 = vpop.trf.xlu0
    %v390 = vpop.trf.xlu0
    %v391 = vpop.trf.xlu0
    %v392 = vpop.trf.xlu0
    %v393 = vpop.trf.xlu0
    %v394 = vpop.trf.xlu0
    %v395 = vpop.trf.xlu0
    %396 = vxpose.xlu0.b32.start [1/16] %v51, 128
    %397 = vxpose.xlu0.b32.cont [2/16] %v52, 128
    %398 = vxpose.xlu0.b32.cont [3/16] 0.0, 128
    %399 = vxpose.xlu0.b32.cont [4/16] 0.0, 128
    %400 = vxpose.xlu0.b32.cont [5/16] 0.0, 128
    %401 = vxpose.xlu0.b32.cont [6/16] 0.0, 128
    %402 = vxpose.xlu0.b32.cont [7/16] 0.0, 128
    %403 = vxpose.xlu0.b32.cont [8/16] 0.0, 128
    %404 = vxpose.xlu0.b32.cont [9/16] 0.0, 128
    %405 = vxpose.xlu0.b32.cont [10/16] 0.0, 128
    %406 = vxpose.xlu0.b32.cont [11/16] 0.0, 128
    %407 = vxpose.xlu0.b32.cont [12/16] 0.0, 128
    %408 = vxpose.xlu0.b32.cont [13/16] 0.0, 128
    %409 = vxpose.xlu0.b32.cont [14/16] 0.0, 128
    %410 = vxpose.xlu0.b32.cont [15/16] 0.0, 128
    %411 = vxpose.xlu0.b32.end [16/16] 0.0, 128
    %v412 = vpop.trf.xlu0
    %v413 = vpop.trf.xlu0
    %v414 = vpop.trf.xlu0
    %v415 = vpop.trf.xlu0
    %v416 = vpop.trf.xlu0
    %v417 = vpop.trf.xlu0
    %v418 = vpop.trf.xlu0
    %v419 = vpop.trf.xlu0
    %v420 = vpop.trf.xlu0
    %v421 = vpop.trf.xlu0
    %v422 = vpop.trf.xlu0
    %v423 = vpop.trf.xlu0
    %v424 = vpop.trf.xlu0
    %v425 = vpop.trf.xlu0
    %v426 = vpop.trf.xlu0
    %v427 = vpop.trf.xlu0
    %vm428 = vcmask 130048
    %v430 = vsel %vm428, %v380, 0
    %v433 = vsel %vm428, %v381, 0
    %v436 = vsel %vm428, %v382, 0
    %v439 = vsel %vm428, %v383, 0
    %v442 = vsel %vm428, %v384, 0
    %v445 = vsel %vm428, %v385, 0
    %v448 = vsel %vm428, %v386, 0
    %v451 = vsel %vm428, %v387, 0
    %v454 = vsel %vm428, %v412, 0
    %v457 = vsel %vm428, %v413, 0
    %v460 = vsel %vm428, %v414, 0
    %v463 = vsel %vm428, %v415, 0
    %v466 = vsel %vm428, %v416, 0
    %v469 = vsel %vm428, %v417, 0
    %v472 = vsel %vm428, %v418, 0
    %v475 = vsel %vm428, %v419, 0
    %477 = vmatprep.subr.mxu0 0.0
    %478 = vmatpush1.msra.mxu0 %v56
    %479 = vmatprep.subr.mxu0 0.0
    %480 = vmatpush1.msra.mxu0 %v57
    %481 = vmatprep.subr.mxu0 0.0
    %482 = vmatpush1.msra.mxu0 0.0
    %483 = vmatprep.subr.mxu0 0.0
    %484 = vmatpush1.msra.mxu0 0.0
    %485 = vmatprep.subr.mxu0 0.0
    %486 = vmatpush1.msra.mxu0 0.0
    %487 = vmatprep.subr.mxu0 0.0
    %488 = vmatpush1.msra.mxu0 0.0
    %489 = vmatprep.subr.mxu0 0.0
    %490 = vmatpush1.msra.mxu0 0.0
    %491 = vmatprep.subr.mxu0 0.0
    %492 = vmatpush1.msra.mxu0 0.0
    %493 = vmatprep.subr.mxu0 0.0
    %494 = vmatpush1.msra.mxu0 0.0
    %495 = vmatprep.subr.mxu0 0.0
    %496 = vmatpush1.msra.mxu0 0.0
    %497 = vmatprep.subr.mxu0 0.0
    %498 = vmatpush1.msra.mxu0 0.0
    %499 = vmatprep.subr.mxu0 0.0
    %500 = vmatpush1.msra.mxu0 0.0
    %501 = vmatprep.subr.mxu0 0.0
    %502 = vmatpush1.msra.mxu0 0.0
    %503 = vmatprep.subr.mxu0 0.0
    %504 = vmatpush1.msra.mxu0 0.0
    %505 = vmatprep.subr.mxu0 0.0
    %506 = vmatpush1.msra.mxu0 0.0
    %507 = vmatprep.subr.mxu0 0.0
    %508 = vmatpush1.msra.mxu0 0.0
    %509 = vmatprep.subr.mxu0 0.0
    %510 = vmatpush1.msra.mxu0 0.0
    %511 = vmatprep.subr.mxu0 0.0
    %512 = vmatpush1.msra.mxu0 0.0
    %513 = vmatprep.subr.mxu0 0.0
    %514 = vmatpush1.msra.mxu0 0.0
    %515 = vmatprep.subr.mxu0 0.0
    %516 = vmatpush1.msra.mxu0 0.0
    %517 = vmatprep.subr.mxu0 0.0
    %518 = vmatpush1.msra.mxu0 0.0
    %519 = vmatprep.subr.mxu0 0.0
    %520 = vmatpush1.msra.mxu0 0.0
    %521 = vmatprep.subr.mxu0 0.0
    %522 = vmatpush1.msra.mxu0 0.0
    %523 = vmatprep.subr.mxu0 0.0
    %524 = vmatpush1.msra.mxu0 0.0
    %525 = vmatprep.subr.mxu0 0.0
    %526 = vmatpush1.msra.mxu0 0.0
    %527 = vmatprep.subr.mxu0 0.0
    %528 = vmatpush1.msra.mxu0 0.0
    %529 = vmatprep.subr.mxu0 0.0
    %530 = vmatpush1.msra.mxu0 0.0
    %531 = vmatprep.subr.mxu0 0.0
    %532 = vmatpush1.msra.mxu0 0.0
    %533 = vmatprep.subr.mxu0 0.0
    %534 = vmatpush1.msra.mxu0 0.0
    %535 = vmatprep.subr.mxu0 0.0
    %536 = vmatpush1.msra.mxu0 0.0
    %537 = vmatprep.subr.mxu0 0.0
    %538 = vmatpush1.msra.mxu0 0.0
    %539 = vmatprep.subr.mxu0 0.0
    %540 = vmatpush1.msra.mxu0 0.0
    %541 = vmatprep.mubr.f32.mxu0 0.0
    %542 = vmatmul.mubr.f32.gmra.mrb[0].mxu0 %v430
    %v543 = vpop.f32.mrb[0].mxu0
    %v544 = vadd.f32 0.0, %v543
    %v545 = vpop.f32.mrb[0].mxu0
    %546 = vmatprep.mubr.f32.mxu0 0.0
    %547 = vmatmul.mubr.f32.gmra.mrb[0].mxu0 %v433
    %v548 = vpop.f32.mrb[0].mxu0
    %v549 = vadd.f32 0.0, %v548
    %v550 = vpop.f32.mrb[0].mxu0
    %551 = vmatprep.mubr.f32.mxu0 0.0
    %552 = vmatmul.mubr.f32.gmra.mrb[0].mxu0 %v436
    %v553 = vpop.f32.mrb[0].mxu0
    %v554 = vadd.f32 0.0, %v553
    %v555 = vpop.f32.mrb[0].mxu0
    %556 = vmatprep.mubr.f32.mxu0 0.0
    %557 = vmatmul.mubr.f32.gmra.mrb[0].mxu0 %v439
    %v558 = vpop.f32.mrb[0].mxu0
    %v559 = vadd.f32 0.0, %v558
    %v560 = vpop.f32.mrb[0].mxu0
    %561 = vmatprep.mubr.f32.mxu0 0.0
    %562 = vmatmul.mubr.f32.gmra.mrb[0].mxu0 %v442
    %v563 = vpop.f32.mrb[0].mxu0
    %v564 = vadd.f32 0.0, %v563
    %v565 = vpop.f32.mrb[0].mxu0
    %566 = vmatprep.mubr.f32.mxu0 0.0
    %567 = vmatmul.mubr.f32.gmra.mrb[0].mxu0 %v445
    %v568 = vpop.f32.mrb[0].mxu0
    %v569 = vadd.f32 0.0, %v568
    %v570 = vpop.f32.mrb[0].mxu0
    %571 = vmatprep.mubr.f32.mxu0 0.0
    %572 = vmatmul.mubr.f32.gmra.mrb[0].mxu0 %v448
    %v573 = vpop.f32.mrb[0].mxu0
    %v574 = vadd.f32 0.0, %v573
    %v575 = vpop.f32.mrb[0].mxu0
    %576 = vmatprep.mubr.f32.mxu0 0.0
    %577 = vmatmul.mubr.f32.gmra.mrb[0].mxu0 %v451
    %v578 = vpop.f32.mrb[0].mxu0
    %v579 = vadd.f32 0.0, %v578
    %v580 = vpop.f32.mrb[0].mxu0
    %581 = vmatprep.mubr.f32.mxu0 0.0
    %582 = vmatmul.mubr.f32.gmra.mrb[0].mxu0 %v454
    %v583 = vpop.f32.mrb[0].mxu0
    %v584 = vadd.f32 0.0, %v583
    %v585 = vpop.f32.mrb[0].mxu0
    %586 = vmatprep.mubr.f32.mxu0 0.0
    %587 = vmatmul.mubr.f32.gmra.mrb[0].mxu0 %v457
    %v588 = vpop.f32.mrb[0].mxu0
    %v589 = vadd.f32 0.0, %v588
    %v590 = vpop.f32.mrb[0].mxu0
    %591 = vmatprep.mubr.f32.mxu0 0.0
    %592 = vmatmul.mubr.f32.gmra.mrb[0].mxu0 %v460
    %v593 = vpop.f32.mrb[0].mxu0
    %v594 = vadd.f32 0.0, %v593
    %v595 = vpop.f32.mrb[0].mxu0
    %596 = vmatprep.mubr.f32.mxu0 0.0
    %597 = vmatmul.mubr.f32.gmra.mrb[0].mxu0 %v463
    %v598 = vpop.f32.mrb[0].mxu0
    %v599 = vadd.f32 0.0, %v598
    %v600 = vpop.f32.mrb[0].mxu0
    %601 = vmatprep.mubr.f32.mxu0 0.0
    %602 = vmatmul.mubr.f32.gmra.mrb[0].mxu0 %v466
    %v603 = vpop.f32.mrb[0].mxu0
    %v604 = vadd.f32 0.0, %v603
    %v605 = vpop.f32.mrb[0].mxu0
    %606 = vmatprep.mubr.f32.mxu0 0.0
    %607 = vmatmul.mubr.f32.gmra.mrb[0].mxu0 %v469
    %v608 = vpop.f32.mrb[0].mxu0
    %v609 = vadd.f32 0.0, %v608
    %v610 = vpop.f32.mrb[0].mxu0
    %611 = vmatprep.mubr.f32.mxu0 0.0
    %612 = vmatmul.mubr.f32.gmra.mrb[0].mxu0 %v472
    %v613 = vpop.f32.mrb[0].mxu0
    %v614 = vadd.f32 0.0, %v613
    %v615 = vpop.f32.mrb[0].mxu0
    %616 = vmatprep.mubr.f32.mxu0 0.0
    %617 = vmatmul.mubr.f32.gmra.mrb[0].mxu0 %v475
    %v618 = vpop.f32.mrb[0].mxu0
    %v619 = vadd.f32 0.0, %v618
    %v620 = vpop.f32.mrb[0].mxu0
    %621 = vdwg.mxu0
    %v624 = vunpack.c.l.s4 1966171168
    %v625 = vunpack.c.0.s8 %v624
    %v626 = vlaneseq
    %v627 = vshrl.u32 %v626, 7
    %v628 = vsub.s32 %v625, %v627
    %v629 = vrot.slane %v363, %v628
    %v630 = vcombine.high %v629, %v629
    %v632 = vunpack.c.l.s4 1966171168
    %v633 = vunpack.c.0.s8 %v632
    %v634 = vlaneseq
    %v635 = vshrl.u32 %v634, 7
    %v636 = vsub.s32 %v633, %v635
    %v637 = vrot.slane %v629, %v636
    %v639 = vunpack.c.l.s4 1966171168
    %v640 = vunpack.c.0.s8 %v639
    %v641 = vlaneseq
    %v642 = vshrl.u32 %v641, 7
    %v643 = vsub.s32 %v640, %v642
    %v644 = vrot.slane %v630, %v643
    %v645 = vlaneseq
    %v646 = vshrl.u32 %v645, 7
    %v647 = vsub.s32 0, %v646
    %v648 = vrot.slane %v637, %v647
    %v649 = vlaneseq
    %v650 = vshrl.u32 %v649, 7
    %v651 = vsub.s32 0, %v650
    %v652 = vrot.slane %v644, %v651
    %v655 = vmul.f32 %v544, %v648
    %v656 = vmul.f32 %v549, %v648
    %v657 = vmul.f32 %v554, %v648
    %v658 = vmul.f32 %v559, %v648
    %v659 = vmul.f32 %v564, %v648
    %v660 = vmul.f32 %v569, %v648
    %v661 = vmul.f32 %v574, %v648
    %v662 = vmul.f32 %v579, %v648
    %v663 = vmul.f32 %v584, %v652
    %v664 = vmul.f32 %v589, %v652
    %v665 = vmul.f32 %v594, %v652
    %v666 = vmul.f32 %v599, %v652
    %v667 = vmul.f32 %v604, %v652
    %v668 = vmul.f32 %v609, %v652
    %v669 = vmul.f32 %v614, %v652
    %v670 = vmul.f32 %v619, %v652
    %v671 = vlaneseq
    %v672 = vshrl.u32 %v671, 7
    %v673 = vsub.s32 1, %v672
    %v674 = vrot.slane %v58, %v673
    %v675 = vmul.f32 %v655, %v674
    %v676 = vmul.f32 %v656, %v674
    %v677 = vmul.f32 %v657, %v674
    %v678 = vmul.f32 %v658, %v674
    %v679 = vmul.f32 %v659, %v674
    %v680 = vmul.f32 %v660, %v674
    %v681 = vmul.f32 %v661, %v674
    %v682 = vmul.f32 %v662, %v674
    %v683 = vmul.f32 %v663, %v674
    %v684 = vmul.f32 %v664, %v674
    %v685 = vmul.f32 %v665, %v674
    %v686 = vmul.f32 %v666, %v674
    %v687 = vmul.f32 %v667, %v674
    %v688 = vmul.f32 %v668, %v674
    %v689 = vmul.f32 %v669, %v674
    %v690 = vmul.f32 %v670, %v674
    %v691 = vsel %vm428, %v675, 0.0
    %692 = vadd.xlane.f32.xlu0 %v691
    %v693 = vpop.xlane.xlu0 %692
    %v694 = vsel %vm428, %v676, 0.0
    %695 = vadd.xlane.f32.xlu0 %v694
    %v696 = vpop.xlane.xlu0 %695
    %v697 = vsel %vm428, %v677, 0.0
    %698 = vadd.xlane.f32.xlu0 %v697
    %v699 = vpop.xlane.xlu0 %698
    %v700 = vsel %vm428, %v678, 0.0
    %701 = vadd.xlane.f32.xlu0 %v700
    %v702 = vpop.xlane.xlu0 %701
    %v703 = vsel %vm428, %v679, 0.0
    %704 = vadd.xlane.f32.xlu0 %v703
    %v705 = vpop.xlane.xlu0 %704
    %v706 = vsel %vm428, %v680, 0.0
    %707 = vadd.xlane.f32.xlu0 %v706
    %v708 = vpop.xlane.xlu0 %707
    %v709 = vsel %vm428, %v681, 0.0
    %710 = vadd.xlane.f32.xlu0 %v709
    %v711 = vpop.xlane.xlu0 %710
    %v712 = vsel %vm428, %v682, 0.0
    %713 = vadd.xlane.f32.xlu0 %v712
    %v714 = vpop.xlane.xlu0 %713
    %v715 = vsel %vm428, %v683, 0.0
    %716 = vadd.xlane.f32.xlu0 %v715
    %v717 = vpop.xlane.xlu0 %716
    %v718 = vsel %vm428, %v684, 0.0
    %719 = vadd.xlane.f32.xlu0 %v718
    %v720 = vpop.xlane.xlu0 %719
    %v721 = vsel %vm428, %v685, 0.0
    %722 = vadd.xlane.f32.xlu0 %v721
    %v723 = vpop.xlane.xlu0 %722
    %v724 = vsel %vm428, %v686, 0.0
    %725 = vadd.xlane.f32.xlu0 %v724
    %v726 = vpop.xlane.xlu0 %725
    %v727 = vsel %vm428, %v687, 0.0
    %728 = vadd.xlane.f32.xlu0 %v727
    %v729 = vpop.xlane.xlu0 %728
    %v730 = vsel %vm428, %v688, 0.0
    %731 = vadd.xlane.f32.xlu0 %v730
    %v732 = vpop.xlane.xlu0 %731
    %v733 = vsel %vm428, %v689, 0.0
    %734 = vadd.xlane.f32.xlu0 %v733
    %v735 = vpop.xlane.xlu0 %734
    %v736 = vsel %vm428, %v690, 0.0
    %737 = vadd.xlane.f32.xlu0 %v736
    %v738 = vpop.xlane.xlu0 %737
    %v739 = vld [vmem:[%s4] sm:$0xff]
    %v740 = vld [vmem:[%s4 + $0x8] sm:$0x1]
    %v745 = vadd.s32 %v219, 7
    %v746 = vlaneseq
    %v747 = vshrl.u32 %v746, 7
    %v748 = vsub.s32 %v745, %v747
    %v749 = vrot.slane %v711, %v748
    %v750 = vadd.s32 %v219, 4294967295
    %v751 = vlaneseq
    %v752 = vshrl.u32 %v751, 7
    %v753 = vsub.s32 %v750, %v752
    %v754 = vrot.slane %v714, %v753
    %vm755 = vcmask 72712
    %v756 = vsel %vm755, %v754, %v749
    %v757 = vlaneseq
    %v758 = vshrl.u32 %v757, 7
    %v759 = vsub.s32 %v745, %v758
    %v760 = vrot.slane %v735, %v759
    %v761 = vlaneseq
    %v762 = vshrl.u32 %v761, 7
    %v763 = vsub.s32 %v750, %v762
    %v764 = vrot.slane %v738, %v763
    %v765 = vsel %vm755, %v764, %v760
    %v780 = vadd.s32 %v219, 4294967287
    %v781 = vlaneseq
    %v782 = vshrl.u32 %v781, 7
    %v783 = vsub.s32 %v780, %v782
    %v784 = vrot.slane %v693, %v783
    %v785 = vadd.s32 %v219, 4294967279
    %v786 = vlaneseq
    %v787 = vshrl.u32 %v786, 7
    %v788 = vsub.s32 %v785, %v787
    %v789 = vrot.slane %v696, %v788
    %vm790 = vcmask 203912
    %v791 = vsel %vm790, %v789, %v784
    %v792 = vadd.s32 %v219, 4294967271
    %v793 = vlaneseq
    %v794 = vshrl.u32 %v793, 7
    %v795 = vsub.s32 %v792, %v794
    %v796 = vrot.slane %v699, %v795
    %vm797 = vcmask 269512
    %v798 = vsel %vm797, %v796, %v791
    %v799 = vadd.s32 %v219, 4294967263
    %v800 = vlaneseq
    %v801 = vshrl.u32 %v800, 7
    %v802 = vsub.s32 %v799, %v801
    %v803 = vrot.slane %v702, %v802
    %vm804 = vcmask 335112
    %v805 = vsel %vm804, %v803, %v798
    %v806 = vadd.s32 %v219, 4294967255
    %v807 = vlaneseq
    %v808 = vshrl.u32 %v807, 7
    %v809 = vsub.s32 %v806, %v808
    %v810 = vrot.slane %v705, %v809
    %vm811 = vcmask 400712
    %v812 = vsel %vm811, %v810, %v805
    %v813 = vadd.s32 %v219, 4294967247
    %v814 = vlaneseq
    %v815 = vshrl.u32 %v814, 7
    %v816 = vsub.s32 %v813, %v815
    %v817 = vrot.slane %v708, %v816
    %vm818 = vcmask 466312
    %v819 = vsel %vm818, %v817, %v812
    %v820 = vadd.s32 %v219, 4294967239
    %v821 = vlaneseq
    %v822 = vshrl.u32 %v821, 7
    %v823 = vsub.s32 %v820, %v822
    %v824 = vrot.slane %v711, %v823
    %vm825 = vcmask 531912
    %v826 = vsel %vm825, %v824, %v819
    %v827 = vlaneseq
    %v828 = vshrl.u32 %v827, 7
    %v829 = vsub.s32 %v780, %v828
    %v830 = vrot.slane %v717, %v829
    %v831 = vlaneseq
    %v832 = vshrl.u32 %v831, 7
    %v833 = vsub.s32 %v785, %v832
    %v834 = vrot.slane %v720, %v833
    %v835 = vsel %vm790, %v834, %v830
    %v836 = vlaneseq
    %v837 = vshrl.u32 %v836, 7
    %v838 = vsub.s32 %v792, %v837
    %v839 = vrot.slane %v723, %v838
    %v840 = vsel %vm797, %v839, %v835
    %v841 = vlaneseq
    %v842 = vshrl.u32 %v841, 7
    %v843 = vsub.s32 %v799, %v842
    %v844 = vrot.slane %v726, %v843
    %v845 = vsel %vm804, %v844, %v840
    %v846 = vlaneseq
    %v847 = vshrl.u32 %v846, 7
    %v848 = vsub.s32 %v806, %v847
    %v849 = vrot.slane %v729, %v848
    %v850 = vsel %vm811, %v849, %v845
    %v851 = vlaneseq
    %v852 = vshrl.u32 %v851, 7
    %v853 = vsub.s32 %v813, %v852
    %v854 = vrot.slane %v732, %v853
    %v855 = vsel %vm818, %v854, %v850
    %v856 = vlaneseq
    %v857 = vshrl.u32 %v856, 7
    %v858 = vsub.s32 %v820, %v857
    %v859 = vrot.slane %v735, %v858
    %v860 = vsel %vm825, %v859, %v855
    %vm863 = vcmask 72704
    %v864 = vsel %vm863, %v756, %v826
    %v865 = vsel %vm863, %v765, %v860
    %v866 = vlaneseq
    %v867 = vshrl.u32 %v866, 7
    %v868 = vsub.s32 0, %v867
    %v869 = vrot.slane %v739, %v868
    %v870 = vmul.f32 %v869, %v864
    %v871 = vmul.f32 %v869, %v865
    %v872 = vadd.f32 %v870, 0.0
    %v873 = vadd.f32 %v871, 0.0
    %v874 = vlaneseq
    %v875 = vshrl.u32 %v874, 7
    %v876 = vsub.s32 %v219, %v875
    %v877 = vrot.slane %v714, %v876
    %v878 = vlaneseq
    %v879 = vshrl.u32 %v878, 7
    %v880 = vsub.s32 %v219, %v879
    %v881 = vrot.slane %v738, %v880
    %v882 = vsel %vm95, %v881, %v877
    %v884 = vlaneseq
    %v885 = vshrl.u32 %v884, 7
    %v886 = vsub.s32 %v224, %v885
    %v887 = vrot.slane %v693, %v886
    %v888 = vadd.s32 %v219, 4294967280
    %v889 = vlaneseq
    %v890 = vshrl.u32 %v889, 7
    %v891 = vsub.s32 %v888, %v890
    %v892 = vrot.slane %v696, %v891
    %vm893 = vcmask 195712
    %v894 = vsel %vm893, %v892, %v887
    %v895 = vadd.s32 %v219, 4294967272
    %v896 = vlaneseq
    %v897 = vshrl.u32 %v896, 7
    %v898 = vsub.s32 %v895, %v897
    %v899 = vrot.slane %v699, %v898
    %vm900 = vcmask 261312
    %v901 = vsel %vm900, %v899, %v894
    %v902 = vadd.s32 %v219, 4294967264
    %v903 = vlaneseq
    %v904 = vshrl.u32 %v903, 7
    %v905 = vsub.s32 %v902, %v904
    %v906 = vrot.slane %v702, %v905
    %vm907 = vcmask 326912
    %v908 = vsel %vm907, %v906, %v901
    %v909 = vadd.s32 %v219, 4294967256
    %v910 = vlaneseq
    %v911 = vshrl.u32 %v910, 7
    %v912 = vsub.s32 %v909, %v911
    %v913 = vrot.slane %v705, %v912
    %vm914 = vcmask 392512
    %v915 = vsel %vm914, %v913, %v908
    %v916 = vadd.s32 %v219, 4294967248
    %v917 = vlaneseq
    %v918 = vshrl.u32 %v917, 7
    %v919 = vsub.s32 %v916, %v918
    %v920 = vrot.slane %v708, %v919
    %vm921 = vcmask 458112
    %v922 = vsel %vm921, %v920, %v915
    %v923 = vadd.s32 %v219, 4294967240
    %v924 = vlaneseq
    %v925 = vshrl.u32 %v924, 7
    %v926 = vsub.s32 %v923, %v925
    %v927 = vrot.slane %v711, %v926
    %vm928 = vcmask 523712
    %v929 = vsel %vm928, %v927, %v922
    %v930 = vlaneseq
    %v931 = vshrl.u32 %v930, 7
    %v932 = vsub.s32 %v224, %v931
    %v933 = vrot.slane %v717, %v932
    %v934 = vlaneseq
    %v935 = vshrl.u32 %v934, 7
    %v936 = vsub.s32 %v888, %v935
    %v937 = vrot.slane %v720, %v936
    %v938 = vsel %vm893, %v937, %v933
    %v939 = vlaneseq
    %v940 = vshrl.u32 %v939, 7
    %v941 = vsub.s32 %v895, %v940
    %v942 = vrot.slane %v723, %v941
    %v943 = vsel %vm900, %v942, %v938
    %v944 = vlaneseq
    %v945 = vshrl.u32 %v944, 7
    %v946 = vsub.s32 %v902, %v945
    %v947 = vrot.slane %v726, %v946
    %v948 = vsel %vm907, %v947, %v943
    %v949 = vlaneseq
    %v950 = vshrl.u32 %v949, 7
    %v951 = vsub.s32 %v909, %v950
    %v952 = vrot.slane %v729, %v951
    %v953 = vsel %vm914, %v952, %v948
    %v954 = vlaneseq
    %v955 = vshrl.u32 %v954, 7
    %v956 = vsub.s32 %v916, %v955
    %v957 = vrot.slane %v732, %v956
    %v958 = vsel %vm921, %v957, %v953
    %v959 = vlaneseq
    %v960 = vshrl.u32 %v959, 7
    %v961 = vsub.s32 %v923, %v960
    %v962 = vrot.slane %v735, %v961
    %v963 = vsel %vm928, %v962, %v958
    %v964 = vsel %vm95, %v963, %v929
    %vm966 = vcmask 64512
    %v967 = vsel %vm966, %v882, %v964
    %v968 = vlaneseq
    %v969 = vshrl.u32 %v968, 7
    %v970 = vsub.s32 1, %v969
    %v971 = vrot.slane %v739, %v970
    %v972 = vmul.f32 %v971, %v967
    %v974 = vrot.slane %v972, 1
    %v976 = vadd.f32 %v872, %v974
    %v977 = vadd.f32 %v873, %v974
    %v978 = vadd.s32 %v219, 1
    %v979 = vlaneseq
    %v980 = vshrl.u32 %v979, 7
    %v981 = vsub.s32 %v978, %v980
    %v982 = vrot.slane %v714, %v981
    %v983 = vlaneseq
    %v984 = vshrl.u32 %v983, 7
    %v985 = vsub.s32 %v978, %v984
    %v986 = vrot.slane %v738, %v985
    %vm987 = vcmask 1042434
    %v988 = vsel %vm987, %v986, %v982
    %v990 = vadd.s32 %v219, 4294967289
    %v991 = vlaneseq
    %v992 = vshrl.u32 %v991, 7
    %v993 = vsub.s32 %v990, %v992
    %v994 = vrot.slane %v693, %v993
    %v995 = vadd.s32 %v219, 4294967281
    %v996 = vlaneseq
    %v997 = vshrl.u32 %v996, 7
    %v998 = vsub.s32 %v995, %v997
    %v999 = vrot.slane %v696, %v998
    %vm1000 = vcmask 187512
    %v1001 = vsel %vm1000, %v999, %v994
    %v1002 = vadd.s32 %v219, 4294967273
    %v1003 = vlaneseq
    %v1004 = vshrl.u32 %v1003, 7
    %v1005 = vsub.s32 %v1002, %v1004
    %v1006 = vrot.slane %v699, %v1005
    %vm1007 = vcmask 253112
    %v1008 = vsel %vm1007, %v1006, %v1001
    %v1009 = vadd.s32 %v219, 4294967265
    %v1010 = vlaneseq
    %v1011 = vshrl.u32 %v1010, 7
    %v1012 = vsub.s32 %v1009, %v1011
    %v1013 = vrot.slane %v702, %v1012
    %vm1014 = vcmask 318712
    %v1015 = vsel %vm1014, %v1013, %v1008
    %v1016 = vadd.s32 %v219, 4294967257
    %v1017 = vlaneseq
    %v1018 = vshrl.u32 %v1017, 7
    %v1019 = vsub.s32 %v1016, %v1018
    %v1020 = vrot.slane %v705, %v1019
    %vm1021 = vcmask 384312
    %v1022 = vsel %vm1021, %v1020, %v1015
    %v1023 = vadd.s32 %v219, 4294967249
    %v1024 = vlaneseq
    %v1025 = vshrl.u32 %v1024, 7
    %v1026 = vsub.s32 %v1023, %v1025
    %v1027 = vrot.slane %v708, %v1026
    %vm1028 = vcmask 449912
    %v1029 = vsel %vm1028, %v1027, %v1022
    %v1030 = vadd.s32 %v219, 4294967241
    %v1031 = vlaneseq
    %v1032 = vshrl.u32 %v1031, 7
    %v1033 = vsub.s32 %v1030, %v1032
    %v1034 = vrot.slane %v711, %v1033
    %vm1035 = vcmask 515512
    %v1036 = vsel %vm1035, %v1034, %v1029
    %v1037 = vadd.s32 %v219, 4294967233
    %v1038 = vlaneseq
    %v1039 = vshrl.u32 %v1038, 7
    %v1040 = vsub.s32 %v1037, %v1039
    %v1041 = vrot.slane %v714, %v1040
    %vm1042 = vcmask 581112
    %v1043 = vsel %vm1042, %v1041, %v1036
    %v1044 = vlaneseq
    %v1045 = vshrl.u32 %v1044, 7
    %v1046 = vsub.s32 %v990, %v1045
    %v1047 = vrot.slane %v717, %v1046
    %v1048 = vlaneseq
    %v1049 = vshrl.u32 %v1048, 7
    %v1050 = vsub.s32 %v995, %v1049
    %v1051 = vrot.slane %v720, %v1050
    %v1052 = vsel %vm1000, %v1051, %v1047
    %v1053 = vlaneseq
    %v1054 = vshrl.u32 %v1053, 7
    %v1055 = vsub.s32 %v1002, %v1054
    %v1056 = vrot.slane %v723, %v1055
    %v1057 = vsel %vm1007, %v1056, %v1052
    %v1058 = vlaneseq
    %v1059 = vshrl.u32 %v1058, 7
    %v1060 = vsub.s32 %v1009, %v1059
    %v1061 = vrot.slane %v726, %v1060
    %v1062 = vsel %vm1014, %v1061, %v1057
    %v1063 = vlaneseq
    %v1064 = vshrl.u32 %v1063, 7
    %v1065 = vsub.s32 %v1016, %v1064
    %v1066 = vrot.slane %v729, %v1065
    %v1067 = vsel %vm1021, %v1066, %v1062
    %v1068 = vlaneseq
    %v1069 = vshrl.u32 %v1068, 7
    %v1070 = vsub.s32 %v1023, %v1069
    %v1071 = vrot.slane %v732, %v1070
    %v1072 = vsel %vm1028, %v1071, %v1067
    %v1073 = vlaneseq
    %v1074 = vshrl.u32 %v1073, 7
    %v1075 = vsub.s32 %v1030, %v1074
    %v1076 = vrot.slane %v735, %v1075
    %v1077 = vsel %vm1035, %v1076, %v1072
    %v1078 = vlaneseq
    %v1079 = vshrl.u32 %v1078, 7
    %v1080 = vsub.s32 %v1037, %v1079
    %v1081 = vrot.slane %v738, %v1080
    %v1082 = vsel %vm1042, %v1081, %v1077
    %v1083 = vsel %vm987, %v1082, %v1043
    %vm1085 = vcmask 56320
    %v1086 = vsel %vm1085, %v988, %v1083
    %v1087 = vlaneseq
    %v1088 = vshrl.u32 %v1087, 7
    %v1089 = vsub.s32 2, %v1088
    %v1090 = vrot.slane %v739, %v1089
    %v1091 = vmul.f32 %v1090, %v1086
    %v1093 = vrot.slane %v1091, 2
    %v1095 = vadd.f32 %v976, %v1093
    %v1096 = vadd.f32 %v977, %v1093
    %v1097 = vrot.slane %v738, 7
    %v1100 = vlaneseq
    %v1101 = vshrl.u32 %v1100, 7
    %v1102 = vsub.s32 %v750, %v1101
    %v1103 = vrot.slane %v693, %v1102
    %v1104 = vlaneseq
    %v1105 = vshrl.u32 %v1104, 7
    %v1106 = vsub.s32 %v780, %v1105
    %v1107 = vrot.slane %v696, %v1106
    %vm1108 = vcmask 138312
    %v1109 = vsel %vm1108, %v1107, %v1103
    %v1110 = vlaneseq
    %v1111 = vshrl.u32 %v1110, 7
    %v1112 = vsub.s32 %v785, %v1111
    %v1113 = vrot.slane %v699, %v1112
    %v1114 = vsel %vm790, %v1113, %v1109
    %v1115 = vlaneseq
    %v1116 = vshrl.u32 %v1115, 7
    %v1117 = vsub.s32 %v792, %v1116
    %v1118 = vrot.slane %v702, %v1117
    %v1119 = vsel %vm797, %v1118, %v1114
    %v1120 = vlaneseq
    %v1121 = vshrl.u32 %v1120, 7
    %v1122 = vsub.s32 %v799, %v1121
    %v1123 = vrot.slane %v705, %v1122
    %v1124 = vsel %vm804, %v1123, %v1119
    %v1125 = vlaneseq
    %v1126 = vshrl.u32 %v1125, 7
    %v1127 = vsub.s32 %v806, %v1126
    %v1128 = vrot.slane %v708, %v1127
    %v1129 = vsel %vm811, %v1128, %v1124
    %v1130 = vlaneseq
    %v1131 = vshrl.u32 %v1130, 7
    %v1132 = vsub.s32 %v813, %v1131
    %v1133 = vrot.slane %v711, %v1132
    %v1134 = vsel %vm818, %v1133, %v1129
    %v1135 = vlaneseq
    %v1136 = vshrl.u32 %v1135, 7
    %v1137 = vsub.s32 %v820, %v1136
    %v1138 = vrot.slane %v714, %v1137
    %v1139 = vsel %vm825, %v1138, %v1134
    %v1140 = vlaneseq
    %v1141 = vshrl.u32 %v1140, 7
    %v1142 = vsub.s32 %v750, %v1141
    %v1143 = vrot.slane %v717, %v1142
    %v1144 = vlaneseq
    %v1145 = vshrl.u32 %v1144, 7
    %v1146 = vsub.s32 %v780, %v1145
    %v1147 = vrot.slane %v720, %v1146
    %v1148 = vsel %vm1108, %v1147, %v1143
    %v1149 = vlaneseq
    %v1150 = vshrl.u32 %v1149, 7
    %v1151 = vsub.s32 %v785, %v1150
    %v1152 = vrot.slane %v723, %v1151
    %v1153 = vsel %vm790, %v1152, %v1148
    %v1154 = vlaneseq
    %v1155 = vshrl.u32 %v1154, 7
    %v1156 = vsub.s32 %v792, %v1155
    %v1157 = vrot.slane %v726, %v1156
    %v1158 = vsel %vm797, %v1157, %v1153
    %v1159 = vlaneseq
    %v1160 = vshrl.u32 %v1159, 7
    %v1161 = vsub.s32 %v799, %v1160
    %v1162 = vrot.slane %v729, %v1161
    %v1163 = vsel %vm804, %v1162, %v1158
    %v1164 = vlaneseq
    %v1165 = vshrl.u32 %v1164, 7
    %v1166 = vsub.s32 %v806, %v1165
    %v1167 = vrot.slane %v732, %v1166
    %v1168 = vsel %vm811, %v1167, %v1163
    %v1169 = vlaneseq
    %v1170 = vshrl.u32 %v1169, 7
    %v1171 = vsub.s32 %v813, %v1170
    %v1172 = vrot.slane %v735, %v1171
    %v1173 = vsel %vm818, %v1172, %v1168
    %v1174 = vlaneseq
    %v1175 = vshrl.u32 %v1174, 7
    %v1176 = vsub.s32 %v820, %v1175
    %v1177 = vrot.slane %v738, %v1176
    %v1178 = vsel %vm825, %v1177, %v1173
    %vm1181 = vcmask 7168
    %v1182 = vsel %vm1181, %v714, %v1139
    %v1183 = vsel %vm1181, %v1097, %v1178
    %v1184 = vlaneseq
    %v1185 = vshrl.u32 %v1184, 7
    %v1186 = vsub.s32 3, %v1185
    %v1187 = vrot.slane %v739, %v1186
    %v1188 = vmul.f32 %v1187, %v1182
    %v1189 = vmul.f32 %v1187, %v1183
    %v1190 = vadd.f32 %v1095, %v1188
    %v1191 = vadd.f32 %v1096, %v1189
    %v1192 = vlaneseq
    %v1193 = vshrl.u32 %v1192, 7
    %v1194 = vsub.s32 4, %v1193
    %v1195 = vrot.slane %v739, %v1194
    %v1196 = vlaneseq
    %v1197 = vshrl.u32 %v1196, 7
    %v1198 = vsub.s32 %v219, %v1197
    %v1199 = vrot.slane %v693, %v1198
    %v1200 = vlaneseq
    %v1201 = vshrl.u32 %v1200, 7
    %v1202 = vsub.s32 %v224, %v1201
    %v1203 = vrot.slane %v696, %v1202
    %v1204 = vsel %vm229, %v1203, %v1199
    %v1205 = vlaneseq
    %v1206 = vshrl.u32 %v1205, 7
    %v1207 = vsub.s32 %v888, %v1206
    %v1208 = vrot.slane %v699, %v1207
    %v1209 = vsel %vm893, %v1208, %v1204
    %v1210 = vlaneseq
    %v1211 = vshrl.u32 %v1210, 7
    %v1212 = vsub.s32 %v895, %v1211
    %v1213 = vrot.slane %v702, %v1212
    %v1214 = vsel %vm900, %v1213, %v1209
    %v1215 = vlaneseq
    %v1216 = vshrl.u32 %v1215, 7
    %v1217 = vsub.s32 %v902, %v1216
    %v1218 = vrot.slane %v705, %v1217
    %v1219 = vsel %vm907, %v1218, %v1214
    %v1220 = vlaneseq
    %v1221 = vshrl.u32 %v1220, 7
    %v1222 = vsub.s32 %v909, %v1221
    %v1223 = vrot.slane %v708, %v1222
    %v1224 = vsel %vm914, %v1223, %v1219
    %v1225 = vlaneseq
    %v1226 = vshrl.u32 %v1225, 7
    %v1227 = vsub.s32 %v916, %v1226
    %v1228 = vrot.slane %v711, %v1227
    %v1229 = vsel %vm921, %v1228, %v1224
    %v1230 = vlaneseq
    %v1231 = vshrl.u32 %v1230, 7
    %v1232 = vsub.s32 %v923, %v1231
    %v1233 = vrot.slane %v714, %v1232
    %v1234 = vsel %vm928, %v1233, %v1229
    %v1235 = vlaneseq
    %v1236 = vshrl.u32 %v1235, 7
    %v1237 = vsub.s32 %v219, %v1236
    %v1238 = vrot.slane %v717, %v1237
    %v1239 = vlaneseq
    %v1240 = vshrl.u32 %v1239, 7
    %v1241 = vsub.s32 %v224, %v1240
    %v1242 = vrot.slane %v720, %v1241
    %v1243 = vsel %vm229, %v1242, %v1238
    %v1244 = vlaneseq
    %v1245 = vshrl.u32 %v1244, 7
    %v1246 = vsub.s32 %v888, %v1245
    %v1247 = vrot.slane %v723, %v1246
    %v1248 = vsel %vm893, %v1247, %v1243
    %v1249 = vlaneseq
    %v1250 = vshrl.u32 %v1249, 7
    %v1251 = vsub.s32 %v895, %v1250
    %v1252 = vrot.slane %v726, %v1251
    %v1253 = vsel %vm900, %v1252, %v1248
    %v1254 = vlaneseq
    %v1255 = vshrl.u32 %v1254, 7
    %v1256 = vsub.s32 %v902, %v1255
    %v1257 = vrot.slane %v729, %v1256
    %v1258 = vsel %vm907, %v1257, %v1253
    %v1259 = vlaneseq
    %v1260 = vshrl.u32 %v1259, 7
    %v1261 = vsub.s32 %v909, %v1260
    %v1262 = vrot.slane %v732, %v1261
    %v1263 = vsel %vm914, %v1262, %v1258
    %v1264 = vlaneseq
    %v1265 = vshrl.u32 %v1264, 7
    %v1266 = vsub.s32 %v916, %v1265
    %v1267 = vrot.slane %v735, %v1266
    %v1268 = vsel %vm921, %v1267, %v1263
    %v1269 = vlaneseq
    %v1270 = vshrl.u32 %v1269, 7
    %v1271 = vsub.s32 %v923, %v1270
    %v1272 = vrot.slane %v738, %v1271
    %v1273 = vsel %vm928, %v1272, %v1268
    %v1274 = vsel %vm95, %v1273, %v1234
    %v1276 = vmul.f32 %v1195, %v1274
    %v1278 = vrot.slane %v1276, 1
    %v1280 = vadd.f32 %v1190, %v1278
    %v1281 = vadd.f32 %v1191, %v1278
    %v1282 = vlaneseq
    %v1283 = vshrl.u32 %v1282, 7
    %v1284 = vsub.s32 %v978, %v1283
    %v1285 = vrot.slane %v693, %v1284
    %v1286 = vlaneseq
    %v1287 = vshrl.u32 %v1286, 7
    %v1288 = vsub.s32 %v990, %v1287
    %v1289 = vrot.slane %v696, %v1288
    %vm1290 = vcmask 121912
    %v1291 = vsel %vm1290, %v1289, %v1285
    %v1292 = vlaneseq
    %v1293 = vshrl.u32 %v1292, 7
    %v1294 = vsub.s32 %v995, %v1293
    %v1295 = vrot.slane %v699, %v1294
    %v1296 = vsel %vm1000, %v1295, %v1291
    %v1297 = vlaneseq
    %v1298 = vshrl.u32 %v1297, 7
    %v1299 = vsub.s32 %v1002, %v1298
    %v1300 = vrot.slane %v702, %v1299
    %v1301 = vsel %vm1007, %v1300, %v1296
    %v1302 = vlaneseq
    %v1303 = vshrl.u32 %v1302, 7
    %v1304 = vsub.s32 %v1009, %v1303
    %v1305 = vrot.slane %v705, %v1304
    %v1306 = vsel %vm1014, %v1305, %v1301
    %v1307 = vlaneseq
    %v1308 = vshrl.u32 %v1307, 7
    %v1309 = vsub.s32 %v1016, %v1308
    %v1310 = vrot.slane %v708, %v1309
    %v1311 = vsel %vm1021, %v1310, %v1306
    %v1312 = vlaneseq
    %v1313 = vshrl.u32 %v1312, 7
    %v1314 = vsub.s32 %v1023, %v1313
    %v1315 = vrot.slane %v711, %v1314
    %v1316 = vsel %vm1028, %v1315, %v1311
    %v1317 = vlaneseq
    %v1318 = vshrl.u32 %v1317, 7
    %v1319 = vsub.s32 %v1030, %v1318
    %v1320 = vrot.slane %v714, %v1319
    %v1321 = vsel %vm1035, %v1320, %v1316
    %v1322 = vlaneseq
    %v1323 = vshrl.u32 %v1322, 7
    %v1324 = vsub.s32 %v978, %v1323
    %v1325 = vrot.slane %v717, %v1324
    %v1326 = vlaneseq
    %v1327 = vshrl.u32 %v1326, 7
    %v1328 = vsub.s32 %v990, %v1327
    %v1329 = vrot.slane %v720, %v1328
    %v1330 = vsel %vm1290, %v1329, %v1325
    %v1331 = vlaneseq
    %v1332 = vshrl.u32 %v1331, 7
    %v1333 = vsub.s32 %v995, %v1332
    %v1334 = vrot.slane %v723, %v1333
    %v1335 = vsel %vm1000, %v1334, %v1330
    %v1336 = vlaneseq
    %v1337 = vshrl.u32 %v1336, 7
    %v1338 = vsub.s32 %v1002, %v1337
    %v1339 = vrot.slane %v726, %v1338
    %v1340 = vsel %vm1007, %v1339, %v1335
    %v1341 = vlaneseq
    %v1342 = vshrl.u32 %v1341, 7
    %v1343 = vsub.s32 %v1009, %v1342
    %v1344 = vrot.slane %v729, %v1343
    %v1345 = vsel %vm1014, %v1344, %v1340
    %v1346 = vlaneseq
    %v1347 = vshrl.u32 %v1346, 7
    %v1348 = vsub.s32 %v1016, %v1347
    %v1349 = vrot.slane %v732, %v1348
    %v1350 = vsel %vm1021, %v1349, %v1345
    %v1351 = vlaneseq
    %v1352 = vshrl.u32 %v1351, 7
    %v1353 = vsub.s32 %v1023, %v1352
    %v1354 = vrot.slane %v735, %v1353
    %v1355 = vsel %vm1028, %v1354, %v1350
    %v1356 = vlaneseq
    %v1357 = vshrl.u32 %v1356, 7
    %v1358 = vsub.s32 %v1030, %v1357
    %v1359 = vrot.slane %v738, %v1358
    %v1360 = vsel %vm1035, %v1359, %v1355
    %v1361 = vsel %vm987, %v1360, %v1321
    %v1363 = vrot.slane %v693, 7
    %v1364 = vrot.slane %v717, 6
    %v1365 = vsel %vm987, %v1364, %v1363
    %vm1367 = vcmask 515072
    %v1368 = vsel %vm1367, %v1361, %v1365
    %v1369 = vlaneseq
    %v1370 = vshrl.u32 %v1369, 7
    %v1371 = vsub.s32 5, %v1370
    %v1372 = vrot.slane %v739, %v1371
    %v1373 = vmul.f32 %v1372, %v1368
    %v1375 = vrot.slane %v1373, 2
    %v1377 = vadd.f32 %v1280, %v1375
    %v1378 = vadd.f32 %v1281, %v1375
    %v1379 = vlaneseq
    %v1380 = vshrl.u32 %v1379, 7
    %v1381 = vsub.s32 %v745, %v1380
    %v1382 = vrot.slane %v693, %v1381
    %v1383 = vlaneseq
    %v1384 = vshrl.u32 %v1383, 7
    %v1385 = vsub.s32 %v750, %v1384
    %v1386 = vrot.slane %v696, %v1385
    %v1387 = vsel %vm755, %v1386, %v1382
    %v1388 = vlaneseq
    %v1389 = vshrl.u32 %v1388, 7
    %v1390 = vsub.s32 %v780, %v1389
    %v1391 = vrot.slane %v699, %v1390
    %v1392 = vsel %vm1108, %v1391, %v1387
    %v1393 = vlaneseq
    %v1394 = vshrl.u32 %v1393, 7
    %v1395 = vsub.s32 %v785, %v1394
    %v1396 = vrot.slane %v702, %v1395
    %v1397 = vsel %vm790, %v1396, %v1392
    %v1398 = vlaneseq
    %v1399 = vshrl.u32 %v1398, 7
    %v1400 = vsub.s32 %v792, %v1399
    %v1401 = vrot.slane %v705, %v1400
    %v1402 = vsel %vm797, %v1401, %v1397
    %v1403 = vlaneseq
    %v1404 = vshrl.u32 %v1403, 7
    %v1405 = vsub.s32 %v799, %v1404
    %v1406 = vrot.slane %v708, %v1405
    %v1407 = vsel %vm804, %v1406, %v1402
    %v1408 = vlaneseq
    %v1409 = vshrl.u32 %v1408, 7
    %v1410 = vsub.s32 %v806, %v1409
    %v1411 = vrot.slane %v711, %v1410
    %v1412 = vsel %vm811, %v1411, %v1407
    %v1413 = vlaneseq
    %v1414 = vshrl.u32 %v1413, 7
    %v1415 = vsub.s32 %v813, %v1414
    %v1416 = vrot.slane %v714, %v1415
    %v1417 = vsel %vm818, %v1416, %v1412
    %v1418 = vlaneseq
    %v1419 = vshrl.u32 %v1418, 7
    %v1420 = vsub.s32 %v745, %v1419
    %v1421 = vrot.slane %v717, %v1420
    %v1422 = vlaneseq
    %v1423 = vshrl.u32 %v1422, 7
    %v1424 = vsub.s32 %v750, %v1423
    %v1425 = vrot.slane %v720, %v1424
    %v1426 = vsel %vm755, %v1425, %v1421
    %v1427 = vlaneseq
    %v1428 = vshrl.u32 %v1427, 7
    %v1429 = vsub.s32 %v780, %v1428
    %v1430 = vrot.slane %v723, %v1429
    %v1431 = vsel %vm1108, %v1430, %v1426
    %v1432 = vlaneseq
    %v1433 = vshrl.u32 %v1432, 7
    %v1434 = vsub.s32 %v785, %v1433
    %v1435 = vrot.slane %v726, %v1434
    %v1436 = vsel %vm790, %v1435, %v1431
    %v1437 = vlaneseq
    %v1438 = vshrl.u32 %v1437, 7
    %v1439 = vsub.s32 %v792, %v1438
    %v1440 = vrot.slane %v729, %v1439
    %v1441 = vsel %vm797, %v1440, %v1436
    %v1442 = vlaneseq
    %v1443 = vshrl.u32 %v1442, 7
    %v1444 = vsub.s32 %v799, %v1443
    %v1445 = vrot.slane %v732, %v1444
    %v1446 = vsel %vm804, %v1445, %v1441
    %v1447 = vlaneseq
    %v1448 = vshrl.u32 %v1447, 7
    %v1449 = vsub.s32 %v806, %v1448
    %v1450 = vrot.slane %v735, %v1449
    %v1451 = vsel %vm811, %v1450, %v1446
    %v1452 = vlaneseq
    %v1453 = vshrl.u32 %v1452, 7
    %v1454 = vsub.s32 %v813, %v1453
    %v1455 = vrot.slane %v738, %v1454
    %v1456 = vsel %vm818, %v1455, %v1451
    %v1459 = vlaneseq
    %v1460 = vshrl.u32 %v1459, 7
    %v1461 = vsub.s32 %v820, %v1460
    %v1462 = vrot.slane %v693, %v1461
    %v1463 = vlaneseq
    %v1464 = vshrl.u32 %v1463, 7
    %v1465 = vsub.s32 %v820, %v1464
    %v1466 = vrot.slane %v717, %v1465
    %vm1469 = vcmask 465920
    %v1470 = vsel %vm1469, %v1417, %v1462
    %v1471 = vsel %vm1469, %v1456, %v1466
    %v1472 = vlaneseq
    %v1473 = vshrl.u32 %v1472, 7
    %v1474 = vsub.s32 6, %v1473
    %v1475 = vrot.slane %v739, %v1474
    %v1476 = vmul.f32 %v1475, %v1470
    %v1477 = vmul.f32 %v1475, %v1471
    %v1478 = vadd.f32 %v1377, %v1476
    %v1479 = vadd.f32 %v1378, %v1477
    %v1480 = vlaneseq
    %v1481 = vshrl.u32 %v1480, 7
    %v1482 = vsub.s32 %v219, %v1481
    %v1483 = vrot.slane %v696, %v1482
    %v1484 = vlaneseq
    %v1485 = vshrl.u32 %v1484, 7
    %v1486 = vsub.s32 %v224, %v1485
    %v1487 = vrot.slane %v699, %v1486
    %v1488 = vsel %vm229, %v1487, %v1483
    %v1489 = vlaneseq
    %v1490 = vshrl.u32 %v1489, 7
    %v1491 = vsub.s32 %v888, %v1490
    %v1492 = vrot.slane %v702, %v1491
    %v1493 = vsel %vm893, %v1492, %v1488
    %v1494 = vlaneseq
    %v1495 = vshrl.u32 %v1494, 7
    %v1496 = vsub.s32 %v895, %v1495
    %v1497 = vrot.slane %v705, %v1496
    %v1498 = vsel %vm900, %v1497, %v1493
    %v1499 = vlaneseq
    %v1500 = vshrl.u32 %v1499, 7
    %v1501 = vsub.s32 %v902, %v1500
    %v1502 = vrot.slane %v708, %v1501
    %v1503 = vsel %vm907, %v1502, %v1498
    %v1504 = vlaneseq
    %v1505 = vshrl.u32 %v1504, 7
    %v1506 = vsub.s32 %v909, %v1505
    %v1507 = vrot.slane %v711, %v1506
    %v1508 = vsel %vm914, %v1507, %v1503
    %v1509 = vlaneseq
    %v1510 = vshrl.u32 %v1509, 7
    %v1511 = vsub.s32 %v916, %v1510
    %v1512 = vrot.slane %v714, %v1511
    %v1513 = vsel %vm921, %v1512, %v1508
    %v1514 = vlaneseq
    %v1515 = vshrl.u32 %v1514, 7
    %v1516 = vsub.s32 %v219, %v1515
    %v1517 = vrot.slane %v720, %v1516
    %v1518 = vlaneseq
    %v1519 = vshrl.u32 %v1518, 7
    %v1520 = vsub.s32 %v224, %v1519
    %v1521 = vrot.slane %v723, %v1520
    %v1522 = vsel %vm229, %v1521, %v1517
    %v1523 = vlaneseq
    %v1524 = vshrl.u32 %v1523, 7
    %v1525 = vsub.s32 %v888, %v1524
    %v1526 = vrot.slane %v726, %v1525
    %v1527 = vsel %vm893, %v1526, %v1522
    %v1528 = vlaneseq
    %v1529 = vshrl.u32 %v1528, 7
    %v1530 = vsub.s32 %v895, %v1529
    %v1531 = vrot.slane %v729, %v1530
    %v1532 = vsel %vm900, %v1531, %v1527
    %v1533 = vlaneseq
    %v1534 = vshrl.u32 %v1533, 7
    %v1535 = vsub.s32 %v902, %v1534
    %v1536 = vrot.slane %v732, %v1535
    %v1537 = vsel %vm907, %v1536, %v1532
    %v1538 = vlaneseq
    %v1539 = vshrl.u32 %v1538, 7
    %v1540 = vsub.s32 %v909, %v1539
    %v1541 = vrot.slane %v735, %v1540
    %v1542 = vsel %vm914, %v1541, %v1537
    %v1543 = vlaneseq
    %v1544 = vshrl.u32 %v1543, 7
    %v1545 = vsub.s32 %v916, %v1544
    %v1546 = vrot.slane %v738, %v1545
    %v1547 = vsel %vm921, %v1546, %v1542
    %v1548 = vsel %vm95, %v1547, %v1513
    %v1550 = vlaneseq
    %v1551 = vshrl.u32 %v1550, 7
    %v1552 = vsub.s32 %v923, %v1551
    %v1553 = vrot.slane %v693, %v1552
    %v1554 = vlaneseq
    %v1555 = vshrl.u32 %v1554, 7
    %v1556 = vsub.s32 %v923, %v1555
    %v1557 = vrot.slane %v717, %v1556
    %v1558 = vsel %vm95, %v1557, %v1553
    %vm1560 = vcmask 457728
    %v1561 = vsel %vm1560, %v1548, %v1558
    %v1562 = vlaneseq
    %v1563 = vshrl.u32 %v1562, 7
    %v1564 = vsub.s32 7, %v1563
    %v1565 = vrot.slane %v739, %v1564
    %v1566 = vmul.f32 %v1565, %v1561
    %v1568 = vrot.slane %v1566, 1
    %v1570 = vadd.f32 %v1478, %v1568
    %v1571 = vadd.f32 %v1479, %v1568
    %v1572 = vlaneseq
    %v1573 = vshrl.u32 %v1572, 7
    %v1574 = vsub.s32 %v978, %v1573
    %v1575 = vrot.slane %v696, %v1574
    %v1576 = vlaneseq
    %v1577 = vshrl.u32 %v1576, 7
    %v1578 = vsub.s32 %v990, %v1577
    %v1579 = vrot.slane %v699, %v1578
    %v1580 = vsel %vm1290, %v1579, %v1575
    %v1581 = vlaneseq
    %v1582 = vshrl.u32 %v1581, 7
    %v1583 = vsub.s32 %v995, %v1582
    %v1584 = vrot.slane %v702, %v1583
    %v1585 = vsel %vm1000, %v1584, %v1580
    %v1586 = vlaneseq
    %v1587 = vshrl.u32 %v1586, 7
    %v1588 = vsub.s32 %v1002, %v1587
    %v1589 = vrot.slane %v705, %v1588
    %v1590 = vsel %vm1007, %v1589, %v1585
    %v1591 = vlaneseq
    %v1592 = vshrl.u32 %v1591, 7
    %v1593 = vsub.s32 %v1009, %v1592
    %v1594 = vrot.slane %v708, %v1593
    %v1595 = vsel %vm1014, %v1594, %v1590
    %v1596 = vlaneseq
    %v1597 = vshrl.u32 %v1596, 7
    %v1598 = vsub.s32 %v1016, %v1597
    %v1599 = vrot.slane %v711, %v1598
    %v1600 = vsel %vm1021, %v1599, %v1595
    %v1601 = vlaneseq
    %v1602 = vshrl.u32 %v1601, 7
    %v1603 = vsub.s32 %v1023, %v1602
    %v1604 = vrot.slane %v714, %v1603
    %v1605 = vsel %vm1028, %v1604, %v1600
    %v1606 = vlaneseq
    %v1607 = vshrl.u32 %v1606, 7
    %v1608 = vsub.s32 %v978, %v1607
    %v1609 = vrot.slane %v720, %v1608
    %v1610 = vlaneseq
    %v1611 = vshrl.u32 %v1610, 7
    %v1612 = vsub.s32 %v990, %v1611
    %v1613 = vrot.slane %v723, %v1612
    %v1614 = vsel %vm1290, %v1613, %v1609
    %v1615 = vlaneseq
    %v1616 = vshrl.u32 %v1615, 7
    %v1617 = vsub.s32 %v995, %v1616
    %v1618 = vrot.slane %v726, %v1617
    %v1619 = vsel %vm1000, %v1618, %v1614
    %v1620 = vlaneseq
    %v1621 = vshrl.u32 %v1620, 7
    %v1622 = vsub.s32 %v1002, %v1621
    %v1623 = vrot.slane %v729, %v1622
    %v1624 = vsel %vm1007, %v1623, %v1619
    %v1625 = vlaneseq
    %v1626 = vshrl.u32 %v1625, 7
    %v1627 = vsub.s32 %v1009, %v1626
    %v1628 = vrot.slane %v732, %v1627
    %v1629 = vsel %vm1014, %v1628, %v1624
    %v1630 = vlaneseq
    %v1631 = vshrl.u32 %v1630, 7
    %v1632 = vsub.s32 %v1016, %v1631
    %v1633 = vrot.slane %v735, %v1632
    %v1634 = vsel %vm1021, %v1633, %v1629
    %v1635 = vlaneseq
    %v1636 = vshrl.u32 %v1635, 7
    %v1637 = vsub.s32 %v1023, %v1636
    %v1638 = vrot.slane %v738, %v1637
    %v1639 = vsel %vm1028, %v1638, %v1634
    %v1640 = vsel %vm987, %v1639, %v1605
    %v1642 = vlaneseq
    %v1643 = vshrl.u32 %v1642, 7
    %v1644 = vsub.s32 %v1030, %v1643
    %v1645 = vrot.slane %v693, %v1644
    %v1646 = vlaneseq
    %v1647 = vshrl.u32 %v1646, 7
    %v1648 = vsub.s32 %v1037, %v1647
    %v1649 = vrot.slane %v696, %v1648
    %v1650 = vsel %vm1042, %v1649, %v1645
    %v1651 = vlaneseq
    %v1652 = vshrl.u32 %v1651, 7
    %v1653 = vsub.s32 %v1030, %v1652
    %v1654 = vrot.slane %v717, %v1653
    %v1655 = vlaneseq
    %v1656 = vshrl.u32 %v1655, 7
    %v1657 = vsub.s32 %v1037, %v1656
    %v1658 = vrot.slane %v720, %v1657
    %v1659 = vsel %vm1042, %v1658, %v1654
    %v1660 = vsel %vm987, %v1659, %v1650
    %vm1662 = vcmask 449536
    %v1663 = vsel %vm1662, %v1640, %v1660
    %v1664 = vlaneseq
    %v1665 = vshrl.u32 %v1664, 7
    %v1666 = vsub.s32 0, %v1665
    %v1667 = vrot.slane %v740, %v1666
    %v1668 = vmul.f32 %v1667, %v1663
    %v1670 = vrot.slane %v1668, 2
    %v1672 = vadd.f32 %v1570, %v1670
    %v1673 = vadd.f32 %v1571, %v1670
    %vm1676 = vcmask 1040384
    %v1677 = vrot.slane %v1672, 7
    %v1678 = vrot.slane %v1673, 7
    %v1679 = vsel %vm1676, %v1677, %v1678
    %v1681 = vsel %vm98, %v1679, 0.0
    %1682 = vadd.xlane.f32.xlu0 %v1681
    %v1683 = vpop.xlane.xlu0 %1682
    %v1684 = vrot.slane %v1683, 4
    %v1685 = vadd.f32 %v1683, %v1684
    %v1686 = vrot.slane %v1685, 2
    %v1687 = vadd.f32 %v1685, %v1686
    %v1688 = vrot.slane %v1687, 1
    %v1689 = vadd.f32 %v1687, %v1688
    %s1690 = vtos %v1689
    %v1691 = vrcp.pop 128.0
    %s1692 = vtos %v1691
    %s1693 = smul.f32 %s1690, %s1692
    %v1694 = vstv %s1693
    %v1695 = vsub.f32 %v1672, %v1694
    %v1696 = vsub.f32 %v1673, %v1694
    %v1697 = vmul.f32 %v1695, %v1695
    %v1698 = vmul.f32 %v1696, %v1696
    %v1701 = vrot.slane %v1697, 7
    %v1702 = vrot.slane %v1698, 7
    %v1703 = vsel %vm1676, %v1701, %v1702
    %v1705 = vsel %vm98, %v1703, 0.0
    %1706 = vadd.xlane.f32.xlu0 %v1705
    %v1707 = vpop.xlane.xlu0 %1706
    %v1708 = vrot.slane %v1707, 4
    %v1709 = vadd.f32 %v1707, %v1708
    %v1710 = vrot.slane %v1709, 2
    %v1711 = vadd.f32 %v1709, %v1710
    %v1712 = vrot.slane %v1711, 1
    %v1713 = vadd.f32 %v1711, %v1712
    %s1714 = vtos %v1713
    %v1715 = vrcp.pop 128.0
    %s1716 = vtos %v1715
    %s1717 = smul.f32 %s1714, %s1716
    %s1718 = sadd.f32 %s1717, 1e-05
    %v1719 = vstv %s1718
    %v1720 = vrsqrt.pop %v1719
    %s1721 = vtos %v1720
    %v1722 = vstv %s1721
    %v1723 = vmul.f32 %v1695, %v1722
    %v1724 = vmul.f32 %v1696, %v1722
    %v1725 = vstv %s54
    %v1726 = vmul.f32 %v1723, %v1725
    %v1727 = vmul.f32 %v1724, %v1725
    %v1728 = vstv %s55
    %v1729 = vadd.f32 %v1726, %v1728
    %v1730 = vadd.f32 %v1727, %v1728
    %v1731 = vsub.f32 0.0, %v1729
    %v1732 = vsub.f32 0.0, %v1730
    %v1733 = vmul.f32 %v1731, 1.442695
    %v1734 = vpow.pop %v1733
    %v1735 = vmul.f32 %v1732, 1.442695
    %v1736 = vpow.pop %v1735
    %v1737 = vadd.f32 %v1734, 1.0
    %v1738 = vadd.f32 %v1736, 1.0
    %v1739 = vrcp.pop %v1737
    %v1740 = vrcp.pop %v1738
    %v1743 = vlaneseq
    %v1744 = vshrl.u32 %v1743, 7
    %v1745 = vsub.s32 7, %v1744
    %v1746 = vrot.slane %v1739, %v1745
    %1748 = vbcast.lane.b32.xlu0 %v1746, 256
    %v1749 = vpop.permute.xlu0 %1748
    %s1751 = sor.u32 256, 8
    %1752 = vbcast.lane.b32.xlu0 %v1746, %s1751
    %v1753 = vpop.permute.xlu0 %1752
    %s1755 = sor.u32 256, 16
    %1756 = vbcast.lane.b32.xlu0 %v1746, %s1755
    %v1757 = vpop.permute.xlu0 %1756
    %s1759 = sor.u32 256, 24
    %1760 = vbcast.lane.b32.xlu0 %v1746, %s1759
    %v1761 = vpop.permute.xlu0 %1760
    %s1763 = sor.u32 256, 32
    %1764 = vbcast.lane.b32.xlu0 %v1746, %s1763
    %v1765 = vpop.permute.xlu0 %1764
    %s1767 = sor.u32 256, 40
    %1768 = vbcast.lane.b32.xlu0 %v1746, %s1767
    %v1769 = vpop.permute.xlu0 %1768
    %s1771 = sor.u32 256, 48
    %1772 = vbcast.lane.b32.xlu0 %v1746, %s1771
    %v1773 = vpop.permute.xlu0 %1772
    %s1775 = sor.u32 256, 56
    %1776 = vbcast.lane.b32.xlu0 %v1746, %s1775
    %v1777 = vpop.permute.xlu0 %1776
    %v1778 = vlaneseq
    %v1779 = vshrl.u32 %v1778, 7
    %v1780 = vsub.s32 0, %v1779
    %v1781 = vrot.slane %v1740, %v1780
    %1783 = vbcast.lane.b32.xlu0 %v1781, 256
    %v1784 = vpop.permute.xlu0 %1783
    %s1786 = sor.u32 256, 8
    %1787 = vbcast.lane.b32.xlu0 %v1781, %s1786
    %v1788 = vpop.permute.xlu0 %1787
    %s1790 = sor.u32 256, 16
    %1791 = vbcast.lane.b32.xlu0 %v1781, %s1790
    %v1792 = vpop.permute.xlu0 %1791
    %s1794 = sor.u32 256, 24
    %1795 = vbcast.lane.b32.xlu0 %v1781, %s1794
    %v1796 = vpop.permute.xlu0 %1795
    %s1798 = sor.u32 256, 32
    %1799 = vbcast.lane.b32.xlu0 %v1781, %s1798
    %v1800 = vpop.permute.xlu0 %1799
    %s1802 = sor.u32 256, 40
    %1803 = vbcast.lane.b32.xlu0 %v1781, %s1802
    %v1804 = vpop.permute.xlu0 %1803
    %s1806 = sor.u32 256, 48
    %1807 = vbcast.lane.b32.xlu0 %v1781, %s1806
    %v1808 = vpop.permute.xlu0 %1807
    %s1810 = sor.u32 256, 56
    %1811 = vbcast.lane.b32.xlu0 %v1781, %s1810
    %v1812 = vpop.permute.xlu0 %1811
    %v1829 = vmul.f32 %v693, %v1749
    %v1830 = vmul.f32 %v696, %v1753
    %v1831 = vmul.f32 %v699, %v1757
    %v1832 = vmul.f32 %v702, %v1761
    %v1833 = vmul.f32 %v705, %v1765
    %v1834 = vmul.f32 %v708, %v1769
    %v1835 = vmul.f32 %v711, %v1773
    %v1836 = vmul.f32 %v714, %v1777
    %v1837 = vmul.f32 %v717, %v1784
    %v1838 = vmul.f32 %v720, %v1788
    %v1839 = vmul.f32 %v723, %v1792
    %v1840 = vmul.f32 %v726, %v1796
    %v1841 = vmul.f32 %v729, %v1800
    %v1842 = vmul.f32 %v732, %v1804
    %v1843 = vmul.f32 %v735, %v1808
    %v1844 = vmul.f32 %v738, %v1812
    %v1845 = vstv %s53
    %v1846 = vmul.f32 %v1845, %v1829
    %v1847 = vmul.f32 %v1845, %v1830
    %v1848 = vmul.f32 %v1845, %v1831
    %v1849 = vmul.f32 %v1845, %v1832
    %v1850 = vmul.f32 %v1845, %v1833
    %v1851 = vmul.f32 %v1845, %v1834
    %v1852 = vmul.f32 %v1845, %v1835
    %v1853 = vmul.f32 %v1845, %v1836
    %v1854 = vmul.f32 %v1845, %v1837
    %v1855 = vmul.f32 %v1845, %v1838
    %v1856 = vmul.f32 %v1845, %v1839
    %v1857 = vmul.f32 %v1845, %v1840
    %v1858 = vmul.f32 %v1845, %v1841
    %v1859 = vmul.f32 %v1845, %v1842
    %v1860 = vmul.f32 %v1845, %v1843
    %v1861 = vmul.f32 %v1845, %v1844
    %1878 = vset.pattern.permute.xlu0 0
    %1879 = vperm.xlu0 %1878, %v1846
    %v1880 = vpop.permute.xlu0 %1879
    %1881 = vset.pattern.permute.xlu0 0
    %1882 = vperm.xlu0 %1881, %v1847
    %v1883 = vpop.permute.xlu0 %1882
    %1884 = vset.pattern.permute.xlu0 0
    %1885 = vperm.xlu0 %1884, %v1848
    %v1886 = vpop.permute.xlu0 %1885
    %1887 = vset.pattern.permute.xlu0 0
    %1888 = vperm.xlu0 %1887, %v1849
    %v1889 = vpop.permute.xlu0 %1888
    %1890 = vset.pattern.permute.xlu0 0
    %1891 = vperm.xlu0 %1890, %v1850
    %v1892 = vpop.permute.xlu0 %1891
    %1893 = vset.pattern.permute.xlu0 0
    %1894 = vperm.xlu0 %1893, %v1851
    %v1895 = vpop.permute.xlu0 %1894
    %1896 = vset.pattern.permute.xlu0 0
    %1897 = vperm.xlu0 %1896, %v1852
    %v1898 = vpop.permute.xlu0 %1897
    %1899 = vset.pattern.permute.xlu0 0
    %1900 = vperm.xlu0 %1899, %v1853
    %v1901 = vpop.permute.xlu0 %1900
    %1902 = vset.pattern.permute.xlu0 0
    %1903 = vperm.xlu0 %1902, %v1854
    %v1904 = vpop.permute.xlu0 %1903
    %1905 = vset.pattern.permute.xlu0 0
    %1906 = vperm.xlu0 %1905, %v1855
    %v1907 = vpop.permute.xlu0 %1906
    %1908 = vset.pattern.permute.xlu0 0
    %1909 = vperm.xlu0 %1908, %v1856
    %v1910 = vpop.permute.xlu0 %1909
    %1911 = vset.pattern.permute.xlu0 0
    %1912 = vperm.xlu0 %1911, %v1857
    %v1913 = vpop.permute.xlu0 %1912
    %1914 = vset.pattern.permute.xlu0 0
    %1915 = vperm.xlu0 %1914, %v1858
    %v1916 = vpop.permute.xlu0 %1915
    %1917 = vset.pattern.permute.xlu0 0
    %1918 = vperm.xlu0 %1917, %v1859
    %v1919 = vpop.permute.xlu0 %1918
    %1920 = vset.pattern.permute.xlu0 0
    %1921 = vperm.xlu0 %1920, %v1860
    %v1922 = vpop.permute.xlu0 %1921
    %1923 = vset.pattern.permute.xlu0 0
    %1924 = vperm.xlu0 %1923, %v1861
    %v1925 = vpop.permute.xlu0 %1924
    %v1926 = vlaneseq
    %v1927 = vshrl.u32 %v1926, 7
    %v1928 = vsub.s32 %v219, %v1927
    %v1929 = vrot.slane %v1880, %v1928
    %v1930 = vlaneseq
    %v1931 = vshrl.u32 %v1930, 7
    %v1932 = vsub.s32 %v224, %v1931
    %v1933 = vrot.slane %v1883, %v1932
    %v1934 = vsel %vm229, %v1933, %v1929
    %v1935 = vlaneseq
    %v1936 = vshrl.u32 %v1935, 7
    %v1937 = vsub.s32 %v888, %v1936
    %v1938 = vrot.slane %v1886, %v1937
    %v1939 = vsel %vm893, %v1938, %v1934
    %v1940 = vlaneseq
    %v1941 = vshrl.u32 %v1940, 7
    %v1942 = vsub.s32 %v895, %v1941
    %v1943 = vrot.slane %v1889, %v1942
    %v1944 = vsel %vm900, %v1943, %v1939
    %v1945 = vlaneseq
    %v1946 = vshrl.u32 %v1945, 7
    %v1947 = vsub.s32 %v902, %v1946
    %v1948 = vrot.slane %v1892, %v1947
    %v1949 = vsel %vm907, %v1948, %v1944
    %v1950 = vlaneseq
    %v1951 = vshrl.u32 %v1950, 7
    %v1952 = vsub.s32 %v909, %v1951
    %v1953 = vrot.slane %v1895, %v1952
    %v1954 = vsel %vm914, %v1953, %v1949
    %v1955 = vlaneseq
    %v1956 = vshrl.u32 %v1955, 7
    %v1957 = vsub.s32 %v916, %v1956
    %v1958 = vrot.slane %v1898, %v1957
    %v1959 = vsel %vm921, %v1958, %v1954
    %v1960 = vlaneseq
    %v1961 = vshrl.u32 %v1960, 7
    %v1962 = vsub.s32 %v923, %v1961
    %v1963 = vrot.slane %v1901, %v1962
    %v1964 = vsel %vm928, %v1963, %v1959
    %v1965 = vlaneseq
    %v1966 = vshrl.u32 %v1965, 7
    %v1967 = vsub.s32 %v219, %v1966
    %v1968 = vrot.slane %v1904, %v1967
    %v1969 = vlaneseq
    %v1970 = vshrl.u32 %v1969, 7
    %v1971 = vsub.s32 %v224, %v1970
    %v1972 = vrot.slane %v1907, %v1971
    %v1973 = vsel %vm229, %v1972, %v1968
    %v1974 = vlaneseq
    %v1975 = vshrl.u32 %v1974, 7
    %v1976 = vsub.s32 %v888, %v1975
    %v1977 = vrot.slane %v1910, %v1976
    %v1978 = vsel %vm893, %v1977, %v1973
    %v1979 = vlaneseq
    %v1980 = vshrl.u32 %v1979, 7
    %v1981 = vsub.s32 %v895, %v1980
    %v1982 = vrot.slane %v1913, %v1981
    %v1983 = vsel %vm900, %v1982, %v1978
    %v1984 = vlaneseq
    %v1985 = vshrl.u32 %v1984, 7
    %v1986 = vsub.s32 %v902, %v1985
    %v1987 = vrot.slane %v1916, %v1986
    %v1988 = vsel %vm907, %v1987, %v1983
    %v1989 = vlaneseq
    %v1990 = vshrl.u32 %v1989, 7
    %v1991 = vsub.s32 %v909, %v1990
    %v1992 = vrot.slane %v1919, %v1991
    %v1993 = vsel %vm914, %v1992, %v1988
    %v1994 = vlaneseq
    %v1995 = vshrl.u32 %v1994, 7
    %v1996 = vsub.s32 %v916, %v1995
    %v1997 = vrot.slane %v1922, %v1996
    %v1998 = vsel %vm921, %v1997, %v1993
    %v1999 = vlaneseq
    %v2000 = vshrl.u32 %v1999, 7
    %v2001 = vsub.s32 %v923, %v2000
    %v2002 = vrot.slane %v1925, %v2001
    %v2003 = vsel %vm928, %v2002, %v1998
    %v2004 = vsel %vm95, %v2003, %v1964
    %v2006 = vadd.s32 %v219, 4294967232
    %v2007 = vlaneseq
    %v2008 = vshrl.u32 %v2007, 7
    %v2009 = vsub.s32 %v2006, %v2008
    %v2010 = vrot.slane %v1880, %v2009
    %v2011 = vadd.s32 %v219, 4294967224
    %v2012 = vlaneseq
    %v2013 = vshrl.u32 %v2012, 7
    %v2014 = vsub.s32 %v2011, %v2013
    %v2015 = vrot.slane %v1883, %v2014
    %vm2016 = vcmask 654912
    %v2017 = vsel %vm2016, %v2015, %v2010
    %v2018 = vadd.s32 %v219, 4294967216
    %v2019 = vlaneseq
    %v2020 = vshrl.u32 %v2019, 7
    %v2021 = vsub.s32 %v2018, %v2020
    %v2022 = vrot.slane %v1886, %v2021
    %vm2023 = vcmask 720512
    %v2024 = vsel %vm2023, %v2022, %v2017
    %v2025 = vadd.s32 %v219, 4294967208
    %v2026 = vlaneseq
    %v2027 = vshrl.u32 %v2026, 7
    %v2028 = vsub.s32 %v2025, %v2027
    %v2029 = vrot.slane %v1889, %v2028
    %vm2030 = vcmask 786112
    %v2031 = vsel %vm2030, %v2029, %v2024
    %v2032 = vadd.s32 %v219, 4294967200
    %v2033 = vlaneseq
    %v2034 = vshrl.u32 %v2033, 7
    %v2035 = vsub.s32 %v2032, %v2034
    %v2036 = vrot.slane %v1892, %v2035
    %vm2037 = vcmask 851712
    %v2038 = vsel %vm2037, %v2036, %v2031
    %v2039 = vadd.s32 %v219, 4294967192
    %v2040 = vlaneseq
    %v2041 = vshrl.u32 %v2040, 7
    %v2042 = vsub.s32 %v2039, %v2041
    %v2043 = vrot.slane %v1895, %v2042
    %vm2044 = vcmask 917312
    %v2045 = vsel %vm2044, %v2043, %v2038
    %v2046 = vadd.s32 %v219, 4294967184
    %v2047 = vlaneseq
    %v2048 = vshrl.u32 %v2047, 7
    %v2049 = vsub.s32 %v2046, %v2048
    %v2050 = vrot.slane %v1898, %v2049
    %vm2051 = vcmask 982912
    %v2052 = vsel %vm2051, %v2050, %v2045
    %v2053 = vadd.s32 %v219, 4294967176
    %v2054 = vlaneseq
    %v2055 = vshrl.u32 %v2054, 7
    %v2056 = vsub.s32 %v2053, %v2055
    %v2057 = vrot.slane %v1901, %v2056
    %vm2058 = vcmask 1048512
    %v2059 = vsel %vm2058, %v2057, %v2052
    %v2060 = vlaneseq
    %v2061 = vshrl.u32 %v2060, 7
    %v2062 = vsub.s32 %v2006, %v2061
    %v2063 = vrot.slane %v1904, %v2062
    %v2064 = vlaneseq
    %v2065 = vshrl.u32 %v2064, 7
    %v2066 = vsub.s32 %v2011, %v2065
    %v2067 = vrot.slane %v1907, %v2066
    %v2068 = vsel %vm2016, %v2067, %v2063
    %v2069 = vlaneseq
    %v2070 = vshrl.u32 %v2069, 7
    %v2071 = vsub.s32 %v2018, %v2070
    %v2072 = vrot.slane %v1910, %v2071
    %v2073 = vsel %vm2023, %v2072, %v2068
    %v2074 = vlaneseq
    %v2075 = vshrl.u32 %v2074, 7
    %v2076 = vsub.s32 %v2025, %v2075
    %v2077 = vrot.slane %v1913, %v2076
    %v2078 = vsel %vm2030, %v2077, %v2073
    %v2079 = vlaneseq
    %v2080 = vshrl.u32 %v2079, 7
    %v2081 = vsub.s32 %v2032, %v2080
    %v2082 = vrot.slane %v1916, %v2081
    %v2083 = vsel %vm2037, %v2082, %v2078
    %v2084 = vlaneseq
    %v2085 = vshrl.u32 %v2084, 7
    %v2086 = vsub.s32 %v2039, %v2085
    %v2087 = vrot.slane %v1919, %v2086
    %v2088 = vsel %vm2044, %v2087, %v2083
    %v2089 = vlaneseq
    %v2090 = vshrl.u32 %v2089, 7
    %v2091 = vsub.s32 %v2046, %v2090
    %v2092 = vrot.slane %v1922, %v2091
    %v2093 = vsel %vm2051, %v2092, %v2088
    %v2094 = vlaneseq
    %v2095 = vshrl.u32 %v2094, 7
    %v2096 = vsub.s32 %v2053, %v2095
    %v2097 = vrot.slane %v1925, %v2096
    %v2098 = vsel %vm2058, %v2097, %v2093
    %v2099 = vsel %vm95, %v2098, %v2059
    %v2101 = vsel %vm74, %v2004, %v2099
    %v2102 = vld [vmem:[#allocation6] sm:$0xff]
    %v2103 = vld [vmem:[#allocation6 + $0x8] sm:$0xff]
    %v2106 = vcombine.high %v2102, %v2102
    %v2108 = vunpack.c.l.s4 1983009808
    %v2109 = vunpack.c.0.s8 %v2108
    %v2110 = vlaneseq
    %v2111 = vshrl.u32 %v2110, 7
    %v2112 = vsub.s32 %v2109, %v2111
    %v2113 = vrot.slane %v2102, %v2112
    %v2115 = vunpack.c.l.s4 1983009808
    %v2116 = vunpack.c.0.s8 %v2115
    %v2117 = vlaneseq
    %v2118 = vshrl.u32 %v2117, 7
    %v2119 = vsub.s32 %v2116, %v2118
    %v2120 = vrot.slane %v2106, %v2119
    %v2121 = vcombine.high %v2113, %v2113
    %v2122 = vcombine.high %v2120, %v2120
    %v2123 = vcombine.high %v2103, %v2103
    %v2125 = vunpack.c.l.s4 1983009808
    %v2126 = vunpack.c.0.s8 %v2125
    %v2127 = vlaneseq
    %v2128 = vshrl.u32 %v2127, 7
    %v2129 = vsub.s32 %v2126, %v2128
    %v2130 = vrot.slane %v2103, %v2129
    %v2132 = vunpack.c.l.s4 1983009808
    %v2133 = vunpack.c.0.s8 %v2132
    %v2134 = vlaneseq
    %v2135 = vshrl.u32 %v2134, 7
    %v2136 = vsub.s32 %v2133, %v2135
    %v2137 = vrot.slane %v2123, %v2136
    %v2138 = vcombine.high %v2130, %v2130
    %v2139 = vcombine.high %v2137, %v2137
    %v2148 = vadd.f32 %v2101, %v2113
    %v2149 = vadd.f32 %v2101, %v2121
    %v2150 = vadd.f32 %v2101, %v2120
    %v2151 = vadd.f32 %v2101, %v2122
    %v2152 = vadd.f32 %v2101, %v2130
    %v2153 = vadd.f32 %v2101, %v2138
    %v2154 = vadd.f32 %v2101, %v2137
    %v2155 = vadd.f32 %v2101, %v2139
    %v2164 = vcombine.low %v2148, %v2149
    %v2165 = vcombine.low %v2150, %v2151
    %v2167 = vunpack.c.l.s4 1983009808
    %v2168 = vunpack.c.0.s8 %v2167
    %v2169 = vlaneseq
    %v2170 = vshrl.u32 %v2169, 7
    %v2171 = vsub.s32 %v2168, %v2170
    %v2172 = vrot.slane %v2164, %v2171
    %v2174 = vunpack.c.l.s4 1983009808
    %v2175 = vunpack.c.0.s8 %v2174
    %v2176 = vlaneseq
    %v2177 = vshrl.u32 %v2176, 7
    %v2178 = vsub.s32 %v2175, %v2177
    %v2179 = vrot.slane %v2165, %v2178
    %v2180 = vcombine.low %v2172, %v2179
    %v2181 = vcombine.low %v2152, %v2153
    %v2182 = vcombine.low %v2154, %v2155
    %v2184 = vunpack.c.l.s4 1983009808
    %v2185 = vunpack.c.0.s8 %v2184
    %v2186 = vlaneseq
    %v2187 = vshrl.u32 %v2186, 7
    %v2188 = vsub.s32 %v2185, %v2187
    %v2189 = vrot.slane %v2181, %v2188
    %v2191 = vunpack.c.l.s4 1983009808
    %v2192 = vunpack.c.0.s8 %v2191
    %v2193 = vlaneseq
    %v2194 = vshrl.u32 %v2193, 7
    %v2195 = vsub.s32 %v2192, %v2194
    %v2196 = vrot.slane %v2182, %v2195
    %v2197 = vcombine.low %v2189, %v2196
    %2200 = vst [vmem:[#allocation7] sm:$0xff] %v2180
    %2201 = vst [vmem:[#allocation7 + $0x8] sm:$0xff] %v2197
    %v2202 = vsel %vm98, %v2004, inf
    %2203 = vmin.xlane.f32.xlu0 %v2202
    %v2204 = vpop.xlane.xlu0 %2203
    %v2205 = vsel %vm98, %v2004, -inf
    %2206 = vmax.xlane.f32.xlu0 %v2205
    %v2207 = vpop.xlane.xlu0 %2206
    %v2208 = vsub.f32 %v2207, %v2204
    %vm2209 = vcmp.eq.f32.partialorder %v2208, 0.0
    %v2210 = vsel %vm2209, 1e-05, %v2208
    %v2212 = vlaneseq
    %v2213 = vshrl.u32 %v2212, 7
    %v2214 = vsub.s32 0, %v2213
    %v2215 = vrot.slane %v2204, %v2214
    %v2216 = vlaneseq
    %v2217 = vshrl.u32 %v2216, 7
    %v2218 = vsub.s32 1, %v2217
    %v2219 = vrot.slane %v2204, %v2218
    %v2222 = vsub.f32 %v1846, %v2215
    %v2223 = vsub.f32 %v1847, %v2215
    %v2224 = vsub.f32 %v1848, %v2215
    %v2225 = vsub.f32 %v1849, %v2215
    %v2226 = vsub.f32 %v1850, %v2215
    %v2227 = vsub.f32 %v1851, %v2215
    %v2228 = vsub.f32 %v1852, %v2215
    %v2229 = vsub.f32 %v1853, %v2215
    %v2230 = vsub.f32 %v1854, %v2219
    %v2231 = vsub.f32 %v1855, %v2219
    %v2232 = vsub.f32 %v1856, %v2219
    %v2233 = vsub.f32 %v1857, %v2219
    %v2234 = vsub.f32 %v1858, %v2219
    %v2235 = vsub.f32 %v1859, %v2219
    %v2236 = vsub.f32 %v1860, %v2219
    %v2237 = vsub.f32 %v1861, %v2219
    %v2238 = vrcp.pop %v2210
    %v2240 = vlaneseq
    %v2241 = vshrl.u32 %v2240, 7
    %v2242 = vsub.s32 0, %v2241
    %v2243 = vrot.slane %v2238, %v2242
    %v2244 = vlaneseq
    %v2245 = vshrl.u32 %v2244, 7
    %v2246 = vsub.s32 1, %v2245
    %v2247 = vrot.slane %v2238, %v2246
    %v2250 = vmul.f32 %v2222, %v2243
    %v2251 = vmul.f32 %v2223, %v2243
    %v2252 = vmul.f32 %v2224, %v2243
    %v2253 = vmul.f32 %v2225, %v2243
    %v2254 = vmul.f32 %v2226, %v2243
    %v2255 = vmul.f32 %v2227, %v2243
    %v2256 = vmul.f32 %v2228, %v2243
    %v2257 = vmul.f32 %v2229, %v2243
    %v2258 = vmul.f32 %v2230, %v2247
    %v2259 = vmul.f32 %v2231, %v2247
    %v2260 = vmul.f32 %v2232, %v2247
    %v2261 = vmul.f32 %v2233, %v2247
    %v2262 = vmul.f32 %v2234, %v2247
    %v2263 = vmul.f32 %v2235, %v2247
    %v2264 = vmul.f32 %v2236, %v2247
    %v2265 = vmul.f32 %v2237, %v2247
    %2274 = vset.pattern.permute.xlu0 0
    %2275 = vperm.xlu0 %2274, %v2250
    %v2276 = vpop.permute.xlu0 %2275
    %2277 = vset.pattern.permute.xlu0 0
    %2278 = vperm.xlu0 %2277, %v2251
    %v2279 = vpop.permute.xlu0 %2278
    %2280 = vset.pattern.permute.xlu0 0
    %2281 = vperm.xlu0 %2280, %v2252
    %v2282 = vpop.permute.xlu0 %2281
    %2283 = vset.pattern.permute.xlu0 0
    %2284 = vperm.xlu0 %2283, %v2253
    %v2285 = vpop.permute.xlu0 %2284
    %2286 = vset.pattern.permute.xlu0 0
    %2287 = vperm.xlu0 %2286, %v2254
    %v2288 = vpop.permute.xlu0 %2287
    %2289 = vset.pattern.permute.xlu0 0
    %2290 = vperm.xlu0 %2289, %v2255
    %v2291 = vpop.permute.xlu0 %2290
    %2292 = vset.pattern.permute.xlu0 0
    %2293 = vperm.xlu0 %2292, %v2256
    %v2294 = vpop.permute.xlu0 %2293
    %2295 = vset.pattern.permute.xlu0 0
    %2296 = vperm.xlu0 %2295, %v2257
    %v2297 = vpop.permute.xlu0 %2296
    %v2298 = vlaneseq
    %v2299 = vshrl.u32 %v2298, 7
    %v2300 = vsub.s32 %v219, %v2299
    %v2301 = vrot.slane %v2276, %v2300
    %v2302 = vlaneseq
    %v2303 = vshrl.u32 %v2302, 7
    %v2304 = vsub.s32 %v224, %v2303
    %v2305 = vrot.slane %v2279, %v2304
    %v2306 = vsel %vm229, %v2305, %v2301
    %v2307 = vlaneseq
    %v2308 = vshrl.u32 %v2307, 7
    %v2309 = vsub.s32 %v888, %v2308
    %v2310 = vrot.slane %v2282, %v2309
    %v2311 = vsel %vm893, %v2310, %v2306
    %v2312 = vlaneseq
    %v2313 = vshrl.u32 %v2312, 7
    %v2314 = vsub.s32 %v895, %v2313
    %v2315 = vrot.slane %v2285, %v2314
    %v2316 = vsel %vm900, %v2315, %v2311
    %v2317 = vlaneseq
    %v2318 = vshrl.u32 %v2317, 7
    %v2319 = vsub.s32 %v902, %v2318
    %v2320 = vrot.slane %v2288, %v2319
    %v2321 = vsel %vm907, %v2320, %v2316
    %v2322 = vlaneseq
    %v2323 = vshrl.u32 %v2322, 7
    %v2324 = vsub.s32 %v909, %v2323
    %v2325 = vrot.slane %v2291, %v2324
    %v2326 = vsel %vm914, %v2325, %v2321
    %v2327 = vlaneseq
    %v2328 = vshrl.u32 %v2327, 7
    %v2329 = vsub.s32 %v916, %v2328
    %v2330 = vrot.slane %v2294, %v2329
    %v2331 = vsel %vm921, %v2330, %v2326
    %v2332 = vlaneseq
    %v2333 = vshrl.u32 %v2332, 7
    %v2334 = vsub.s32 %v923, %v2333
    %v2335 = vrot.slane %v2297, %v2334
    %v2336 = vsel %vm928, %v2335, %v2331
    %2346 = vset.pattern.permute.xlu0 0
    %2347 = vperm.xlu0 %2346, %v2258
    %v2348 = vpop.permute.xlu0 %2347
    %2349 = vset.pattern.permute.xlu0 0
    %2350 = vperm.xlu0 %2349, %v2259
    %v2351 = vpop.permute.xlu0 %2350
    %2352 = vset.pattern.permute.xlu0 0
    %2353 = vperm.xlu0 %2352, %v2260
    %v2354 = vpop.permute.xlu0 %2353
    %2355 = vset.pattern.permute.xlu0 0
    %2356 = vperm.xlu0 %2355, %v2261
    %v2357 = vpop.permute.xlu0 %2356
    %2358 = vset.pattern.permute.xlu0 0
    %2359 = vperm.xlu0 %2358, %v2262
    %v2360 = vpop.permute.xlu0 %2359
    %2361 = vset.pattern.permute.xlu0 0
    %2362 = vperm.xlu0 %2361, %v2263
    %v2363 = vpop.permute.xlu0 %2362
    %2364 = vset.pattern.permute.xlu0 0
    %2365 = vperm.xlu0 %2364, %v2264
    %v2366 = vpop.permute.xlu0 %2365
    %2367 = vset.pattern.permute.xlu0 0
    %2368 = vperm.xlu0 %2367, %v2265
    %v2369 = vpop.permute.xlu0 %2368
    %v2370 = vlaneseq
    %v2371 = vshrl.u32 %v2370, 7
    %v2372 = vsub.s32 %v2006, %v2371
    %v2373 = vrot.slane %v2348, %v2372
    %v2374 = vlaneseq
    %v2375 = vshrl.u32 %v2374, 7
    %v2376 = vsub.s32 %v2011, %v2375
    %v2377 = vrot.slane %v2351, %v2376
    %v2378 = vsel %vm2016, %v2377, %v2373
    %v2379 = vlaneseq
    %v2380 = vshrl.u32 %v2379, 7
    %v2381 = vsub.s32 %v2018, %v2380
    %v2382 = vrot.slane %v2354, %v2381
    %v2383 = vsel %vm2023, %v2382, %v2378
    %v2384 = vlaneseq
    %v2385 = vshrl.u32 %v2384, 7
    %v2386 = vsub.s32 %v2025, %v2385
    %v2387 = vrot.slane %v2357, %v2386
    %v2388 = vsel %vm2030, %v2387, %v2383
    %v2389 = vlaneseq
    %v2390 = vshrl.u32 %v2389, 7
    %v2391 = vsub.s32 %v2032, %v2390
    %v2392 = vrot.slane %v2360, %v2391
    %v2393 = vsel %vm2037, %v2392, %v2388
    %v2394 = vlaneseq
    %v2395 = vshrl.u32 %v2394, 7
    %v2396 = vsub.s32 %v2039, %v2395
    %v2397 = vrot.slane %v2363, %v2396
    %v2398 = vsel %vm2044, %v2397, %v2393
    %v2399 = vlaneseq
    %v2400 = vshrl.u32 %v2399, 7
    %v2401 = vsub.s32 %v2046, %v2400
    %v2402 = vrot.slane %v2366, %v2401
    %v2403 = vsel %vm2051, %v2402, %v2398
    %v2404 = vlaneseq
    %v2405 = vshrl.u32 %v2404, 7
    %v2406 = vsub.s32 %v2053, %v2405
    %v2407 = vrot.slane %v2369, %v2406
    %v2408 = vsel %vm2058, %v2407, %v2403
    %v2410 = vsel %vm74, %v2336, %v2408
    %2411 = vst [vmem:[#allocation8] sm:$0x1] %v2410
    // Predicated region
    $region30: #{tpu_custom_call.1} parent=1 // pred_check
      _
    $region31: #{tpu_custom_call.1} parent=1 // pred_check_branch
      %2413 = sbr.rel (0) target = $region33
    $region32: #{tpu_custom_call.1} parent=1 // pred_region
      %s2415 = ssub.s32 256, 256
      %2416 = vsyncadd [#allocation4], %s2415
      %s2418 = sshll.u32 [#allocation7], 4
      %s2419 = int_to_ptr.vmem [resolvable:$true] %s2418
      %2421 = dma.vmem_to_hbm [thread:$0]  %s2419, 256, %s5, [#allocation4]
    $region33: #{tpu_custom_call.1} parent=1 // pred_fallthru
      _
    // Predicated region
    $region34: #{tpu_custom_call.1} parent=1 // pred_check
      _
    $region35: #{tpu_custom_call.1} parent=1 // pred_check_branch
      %2423 = sbr.rel (0) target = $region37
    $region36: #{tpu_custom_call.1} parent=1 // pred_region
      %s2425 = ssub.s32 16, 16
      %2426 = vsyncadd [#allocation9], %s2425
      %s2428 = sshll.u32 [#allocation8], 4
      %s2429 = int_to_ptr.vmem [resolvable:$true] %s2428
      %2431 = dma.vmem_to_hbm [thread:$0]  %s2429, 16, %s6, [#allocation9]
    $region37: #{tpu_custom_call.1} parent=1 // pred_fallthru
      _
    // Predicated region
    $region38: #{tpu_custom_call.1} parent=1 // pred_check
      _
    $region39: #{tpu_custom_call.1} parent=1 // pred_check_branch
      %2433 = sbr.rel (0) target = $region41
    $region40: #{tpu_custom_call.1} parent=1 // pred_region
      %2434 = dma.done [#allocation4], 256
    $region41: #{tpu_custom_call.1} parent=1 // pred_fallthru
      _
    // Predicated region
    $region42: #{tpu_custom_call.1} parent=1 // pred_check
      _
    $region43: #{tpu_custom_call.1} parent=1 // pred_check_branch
      %2436 = sbr.rel (0) target = $region45
    $region44: #{tpu_custom_call.1} parent=1 // pred_region
      %2437 = dma.done [#allocation9], 16
    $region45: #{tpu_custom_call.1} parent=1 // pred_fallthru
      _
    %2438 = vsyncpa [#allocation3], 1
    %2439 = vsyncpa [#allocation4], 1
    %2440 = vsyncpa [#allocation9], 1
    %2441 = vsyncpa [#allocation5], 1

</llo_original>
